<compile_context>
chip_gen: v5e
topology: v5e:2x2
jax: 0.10.0
libtpu: 0.0.40
codegen_flags: <defaults>
</compile_context>

<pallas_src>
import functools

import jax
import jax.numpy as jnp
from jax.experimental import pallas as pl
from jax.experimental.pallas import tpu as pltpu

# Scaled-down module constants (original: HIDDEN_SIZE=2048, NUM_HEADS=16, head_dim=128).
HIDDEN_SIZE = 256
NUM_HEADS = 2
HEAD_DIM = HIDDEN_SIZE // NUM_HEADS   # 128 — same head_dim as the original module

SEQ = 8
BATCH = 2


# ----------------------------- in-kernel helpers ------------------------------

def _global_min_max(tiles):
    """Global min/max over a list of 2-D f32 values."""
    mn = jnp.min(tiles[0])
    mx = jnp.max(tiles[0])
    for t in tiles[1:]:
        mn = jnp.minimum(mn, jnp.min(t))
        mx = jnp.maximum(mx, jnp.max(t))
    return mn, mx


def _int4_roundtrip(t, mn, step):
    """int4 quantize -> uint8 nibble pack -> unpack -> dequantize on a (R, C) slab.

    Pairs are columns (j, j + C/2); the uint8 overflow of (q1 << 4) + q2 in the
    reference is reproduced with a mod-256 wrap.  All math is f32 on exact small
    integers, so the integer semantics match.  Like the reference, a constant
    slab (step == 0) is not guarded and yields inf/nan.
    The partner nibble is fetched with pltpu.roll (XLU slot) so the whole round
    trip stays full-width — no sub-128-lane slices or partial stores.
    """
    r, c = t.shape
    qi = jnp.floor((t - mn + 0.5 * step) / step)            # values in [0, 16]
    partner = pltpu.roll(qi, c // 2, 1)                     # qi[:, j -+ C/2]
    lane = jax.lax.broadcasted_iota(jnp.int32, (r, c), 1)
    is_hi = lane < (c // 2)                                 # first half -> high nibble
    a = jnp.where(is_hi, qi, partner)                       # high-nibble source
    b = jnp.where(is_hi, partner, qi)                       # low-nibble source
    word = a * 16.0 + b                                     # <= 272
    packed = jnp.where(word >= 256.0, word - 256.0, word)   # uint8 wrap
    hi = jnp.floor(packed / 16.0)                           # packed >> 4
    lo = packed - hi * 16.0                                 # packed & 0xF
    return jnp.where(is_hi, hi, lo) * step + mn


# ------------------------------- fused kernel ---------------------------------

def _fused_attention_kernel(x_ref, qkv_w_ref, qkv_b_ref, dense_w_ref, o_ref,
                            *, seq, batch, num_heads, head_dim):
    f32 = jnp.float32
    d = head_dim

    # 1) QKV projection: x @ W_qkv.T + b.  Weight stays in torch (N, K) layout;
    #    the transposed contraction runs natively on the MXU (bf16 in, f32 acc).
    x = x_ref[...]                                               # (SB, H) bf16
    mixed = jax.lax.dot_general(
        x, qkv_w_ref[...], (((1,), (1,)), ((), ())),
        preferred_element_type=f32) + qkv_b_ref[...]             # (SB, 3H) f32

    # 2) Split into per-head q/k/v.  Column layout of `mixed` is NUM_HEADS blocks
    #    of [q_h | k_h | v_h]  (torch's view(s,b,NH,3D) + split on the last dim).
    q_heads, k_heads, v_heads = [], [], []
    for h in range(num_heads):
        base = 3 * d * h
        q_heads.append(mixed[:, base:base + d])
        k_heads.append(mixed[:, base + d:base + 2 * d])
        v_heads.append(mixed[:, base + 2 * d:base + 3 * d])

    # 3) First _SeqAllToAll (world_size == 1): the all_to_all itself is the
    #    identity but the int4 round trip is kept.  The scale (min/step) is
    #    GLOBAL over each whole q/k/v tensor; packing is per-head along D.
    def roundtrip_heads(heads):
        mn, mx = _global_min_max(heads)
        step = (mx - mn) / 16.0
        return [_int4_roundtrip(t, mn, step) for t in heads]

    q_heads = roundtrip_heads(q_heads)
    k_heads = roundtrip_heads(k_heads)
    v_heads = roundtrip_heads(v_heads)

    # 4) Core attention with the reference's flash_attn_varlen semantics: the
    #    '(s b)'-flattened token stream is processed as `batch` contiguous chunks
    #    of length `seq`, each with its own causal mask (this mixes batch
    #    elements exactly like the reference code).
    # TODO(synk): flash-attn dropout (p=0.1) is not modeled.
    scale = 1.0 / float(d) ** 0.5
    row = jax.lax.broadcasted_iota(jnp.int32, (seq, seq), 0)
    col = jax.lax.broadcasted_iota(jnp.int32, (seq, seq), 1)
    causal = col <= row                                          # hoisted
    ctx_chunks = []
    for c in range(batch):
        rows = slice(c * seq, (c + 1) * seq)
        ctx_heads = []
        for h in range(num_heads):
            qc = q_heads[h][rows, :].astype(jnp.bfloat16)        # (S, D)
            kc = k_heads[h][rows, :].astype(jnp.bfloat16)
            vc = v_heads[h][rows, :].astype(jnp.bfloat16)
            s = jax.lax.dot_general(qc, kc, (((1,), (1,)), ((), ())),
                                    preferred_element_type=f32) * scale
            s = jnp.where(causal, s, -jnp.inf)
            m = jnp.max(s, axis=-1, keepdims=True)
            p = jnp.exp(s - m)
            l = jnp.sum(p, axis=-1, keepdims=True)
            o = jnp.dot(p.astype(jnp.bfloat16), vc, preferred_element_type=f32)
            ctx_heads.append(o * pl.reciprocal(l, approx=True))
        ctx_chunks.append(jnp.concatenate(ctx_heads, axis=1))    # (S, H)
    # Rows are already in '(s b)' order, so this realizes '(s b) h d -> s b (h d)'.
    context = jnp.concatenate(ctx_chunks, axis=0)                # (SB, H)

    # 5) Second _SeqAllToAll (3-D path): int4 round trip on the context, packed
    #    along the full hidden dim (pairs (j, j + H/2)), global scale.
    mn = jnp.min(context)
    mx = jnp.max(context)
    context = _int4_roundtrip(context, mn, (mx - mn) / 16.0)

    # 6) Dense: context @ W_dense.T (bias is returned, not added).  One
    #    full-width, 128-lane-dense store of the (SB, H) result.
    o_ref[...] = jax.lax.dot_general(
        context.astype(jnp.bfloat16), dense_w_ref[...],
        (((1,), (1,)), ((), ())), preferred_element_type=f32)


# ------------------------------- wrappers --------------------------------------

def prepare_params(params):
    """One-time weight preprocessing: keep torch (out_features, in_features)
    layout (no transpose), narrow the matmul operands to bf16 for the MXU and
    widen the tiny qkv bias to f32 for the f32 accumulator add."""
    return {
        "qkv_w": params["qkv_w"].astype(jnp.bfloat16),              # (3H, H)
        "qkv_b": params["qkv_b"].astype(jnp.float32).reshape(1, -1),  # (1, 3H)
        "dense_w": params["dense_w"].astype(jnp.bfloat16),          # (H, H)
        "dense_b": params["dense_b"],                               # returned as-is
    }


@jax.jit
def attention_forward(hidden_states, prepared):
    """hidden_states: (S, B, H) fp16 -> (output (S, B, H) fp16, bias (H,) fp16)."""
    s, b, h = hidden_states.shape
    d = h // NUM_HEADS
    # '(s b)' flatten (row-major -> flat row = s*B + b).  The only per-call
    # wrapper cast is this tiny activation slab (a few KiB).
    x = hidden_states.reshape(s * b, h).astype(jnp.bfloat16)

    kernel = functools.partial(_fused_attention_kernel,
                               seq=s, batch=b, num_heads=NUM_HEADS, head_dim=d)
    # Single fused invocation; all operands + intermediates fit trivially in VMEM,
    # so no grid / BlockSpec tiling is needed at this size (see header notes for
    # how the production 2048-hidden config would be tiled).
    out = pl.pallas_call(
        kernel,
        out_shape=jax.ShapeDtypeStruct((s * b, h), jnp.float32),
    )(x, prepared["qkv_w"], prepared["qkv_b"], prepared["dense_w"])

    # TODO(synk): emit fp16 straight from the kernel once Mosaic supports f16
    # refs; until then the final (tiny) fp16 rounding stays in the wrapper.
    return out.astype(jnp.float16).reshape(s, b, h), prepared["dense_b"]


# ----------------------------------- main ---------------------------------------

if __name__ == "__main__":
    key = jax.random.PRNGKey(0)
    k1, k2, k3, k4, k5 = jax.random.split(key, 5)

    hidden = (jax.random.normal(k1, (SEQ, BATCH, HIDDEN_SIZE)) * 0.5).astype(jnp.float16)
    params = {
        "qkv_w": (jax.random.normal(k2, (3 * HIDDEN_SIZE, HIDDEN_SIZE)) * 0.02).astype(jnp.float16),
        "qkv_b": (jax.random.normal(k3, (3 * HIDDEN_SIZE,)) * 0.02).astype(jnp.float16),
        "dense_w": (jax.random.normal(k4, (HIDDEN_SIZE, HIDDEN_SIZE)) * 0.02).astype(jnp.float16),
        "dense_b": (jax.random.normal(k5, (HIDDEN_SIZE,)) * 0.02).astype(jnp.float16),
    }

    prepared = prepare_params(params)
    out, bias = attention_forward(hidden, prepared)
    jax.block_until_ready(out)
    jax.block_until_ready(bias)
    assert out.shape == (SEQ, BATCH, HIDDEN_SIZE) and out.dtype == jnp.float16
    assert bias.shape == (HIDDEN_SIZE,) and bias.dtype == jnp.float16
    print("KERNEL_OK")
</pallas_src>

<mosaic_0001>
module attributes {stable_mosaic.version = 11 : i64} {
  func.func @_fused_attention_kernel(%arg0: memref<16x256xbf16, #tpu.memory_space<vmem>>, %arg1: memref<768x256xbf16, #tpu.memory_space<vmem>>, %arg2: memref<1x768xf32, #tpu.memory_space<vmem>>, %arg3: memref<256x256xbf16, #tpu.memory_space<vmem>>, %arg4: memref<16x256xf32, #tpu.memory_space<vmem>>) attributes {dimension_semantics = [], scalar_prefetch = 0 : i64, scratch_operands = 0 : i64, tpu.core_type = #tpu.core_type<tc>} {
    %c0 = arith.constant 0 : index
    %c0_0 = arith.constant 0 : index
    %0 = vector.load %arg0[%c0, %c0_0] : memref<16x256xbf16, #tpu.memory_space<vmem>>, vector<16x256xbf16>
    %c0_1 = arith.constant 0 : index
    %c0_2 = arith.constant 0 : index
    %1 = vector.load %arg1[%c0_1, %c0_2] : memref<768x256xbf16, #tpu.memory_space<vmem>>, vector<768x256xbf16>
    %cst = arith.constant dense<0.000000e+00> : vector<16x768xf32>
    %2 = tpu.matmul %0, %1, %cst {dimension_numbers = #tpu.dot_dimension_numbers<[1], [1], [0], [0], [0, 0, 1, 0], [], []>} : vector<16x256xbf16>, vector<768x256xbf16>, vector<16x768xf32> -> vector<16x768xf32>
    %c0_3 = arith.constant 0 : index
    %c0_4 = arith.constant 0 : index
    %3 = vector.load %arg2[%c0_3, %c0_4] : memref<1x768xf32, #tpu.memory_space<vmem>>, vector<1x768xf32>
    %4 = vector.broadcast %3 : vector<1x768xf32> to vector<16x768xf32>
    %5 = arith.addf %2, %4 : vector<16x768xf32>
    %6 = vector.extract_strided_slice %5 {offsets = [0, 0], sizes = [16, 128], strides = [1, 1]} : vector<16x768xf32> to vector<16x128xf32>
    %7 = vector.extract_strided_slice %5 {offsets = [0, 128], sizes = [16, 128], strides = [1, 1]} : vector<16x768xf32> to vector<16x128xf32>
    %8 = vector.extract_strided_slice %5 {offsets = [0, 256], sizes = [16, 128], strides = [1, 1]} : vector<16x768xf32> to vector<16x128xf32>
    %9 = vector.extract_strided_slice %5 {offsets = [0, 384], sizes = [16, 128], strides = [1, 1]} : vector<16x768xf32> to vector<16x128xf32>
    %10 = vector.extract_strided_slice %5 {offsets = [0, 512], sizes = [16, 128], strides = [1, 1]} : vector<16x768xf32> to vector<16x128xf32>
    %11 = vector.extract_strided_slice %5 {offsets = [0, 640], sizes = [16, 128], strides = [1, 1]} : vector<16x768xf32> to vector<16x128xf32>
    %12 = vector.shape_cast %6 : vector<16x128xf32> to vector<1x16x128xf32>
    %cst_5 = arith.constant dense<0x7F800000> : vector<1xf32>
    %13 = vector.multi_reduction <minimumf>, %12, %cst_5 [1, 2] : vector<1x16x128xf32> to vector<1xf32>
    %14 = vector.shape_cast %13 : vector<1xf32> to vector<1x1x1xf32>
    %15 = vector.extract %14[0, 0, 0] : f32 from vector<1x1x1xf32>
    %16 = vector.shape_cast %6 : vector<16x128xf32> to vector<1x16x128xf32>
    %cst_6 = arith.constant dense<0xFF800000> : vector<1xf32>
    %17 = vector.multi_reduction <maximumf>, %16, %cst_6 [1, 2] : vector<1x16x128xf32> to vector<1xf32>
    %18 = vector.shape_cast %17 : vector<1xf32> to vector<1x1x1xf32>
    %19 = vector.extract %18[0, 0, 0] : f32 from vector<1x1x1xf32>
    %20 = vector.shape_cast %9 : vector<16x128xf32> to vector<1x16x128xf32>
    %cst_7 = arith.constant dense<0x7F800000> : vector<1xf32>
    %21 = vector.multi_reduction <minimumf>, %20, %cst_7 [1, 2] : vector<1x16x128xf32> to vector<1xf32>
    %22 = vector.shape_cast %21 : vector<1xf32> to vector<1x1x1xf32>
    %23 = vector.extract %22[0, 0, 0] : f32 from vector<1x1x1xf32>
    %24 = arith.minimumf %15, %23 : f32
    %25 = vector.shape_cast %9 : vector<16x128xf32> to vector<1x16x128xf32>
    %cst_8 = arith.constant dense<0xFF800000> : vector<1xf32>
    %26 = vector.multi_reduction <maximumf>, %25, %cst_8 [1, 2] : vector<1x16x128xf32> to vector<1xf32>
    %27 = vector.shape_cast %26 : vector<1xf32> to vector<1x1x1xf32>
    %28 = vector.extract %27[0, 0, 0] : f32 from vector<1x1x1xf32>
    %29 = arith.maximumf %19, %28 : f32
    %30 = arith.subf %29, %24 : f32
    %cst_9 = arith.constant 1.600000e+01 : f32
    %31 = arith.divf %30, %cst_9 : f32
    %32 = vector.broadcast %24 : f32 to vector<16x128xf32>
    %33 = arith.subf %6, %32 : vector<16x128xf32>
    %cst_10 = arith.constant 5.000000e-01 : f32
    %34 = arith.mulf %cst_10, %31 : f32
    %35 = vector.broadcast %34 : f32 to vector<16x128xf32>
    %36 = arith.addf %33, %35 : vector<16x128xf32>
    %37 = vector.broadcast %31 : f32 to vector<16x128xf32>
    %38 = arith.divf %36, %37 : vector<16x128xf32>
    %39 = math.floor %38 : vector<16x128xf32>
    %c64_i32 = arith.constant 64 : i32
    %40 = tpu.dynamic_rotate %39 by %c64_i32 dim 1 : vector<16x128xf32>, i32 -> vector<16x128xf32>
    %41 = tpu.iota {dimensions = array<i32: 1>} : vector<16x128xi32>
    %c64_i32_11 = arith.constant 64 : i32
    %42 = vector.broadcast %c64_i32_11 : i32 to vector<16x128xi32>
    %43 = arith.cmpi slt, %41, %42 : vector<16x128xi32>
    %44 = arith.select %43, %39, %40 : vector<16x128xi1>, vector<16x128xf32>
    %45 = arith.select %43, %40, %39 : vector<16x128xi1>, vector<16x128xf32>
    %cst_12 = arith.constant 1.600000e+01 : f32
    %46 = vector.broadcast %cst_12 : f32 to vector<16x128xf32>
    %47 = arith.mulf %44, %46 : vector<16x128xf32>
    %48 = arith.addf %47, %45 : vector<16x128xf32>
    %cst_13 = arith.constant 2.560000e+02 : f32
    %49 = vector.broadcast %cst_13 : f32 to vector<16x128xf32>
    %50 = arith.cmpf oge, %48, %49 : vector<16x128xf32>
    %cst_14 = arith.constant 2.560000e+02 : f32
    %51 = vector.broadcast %cst_14 : f32 to vector<16x128xf32>
    %52 = arith.subf %48, %51 : vector<16x128xf32>
    %53 = arith.select %50, %52, %48 : vector<16x128xi1>, vector<16x128xf32>
    %cst_15 = arith.constant 1.600000e+01 : f32
    %54 = vector.broadcast %cst_15 : f32 to vector<16x128xf32>
    %55 = arith.divf %53, %54 : vector<16x128xf32>
    %56 = math.floor %55 : vector<16x128xf32>
    %cst_16 = arith.constant 1.600000e+01 : f32
    %57 = vector.broadcast %cst_16 : f32 to vector<16x128xf32>
    %58 = arith.mulf %56, %57 : vector<16x128xf32>
    %59 = arith.subf %53, %58 : vector<16x128xf32>
    %60 = arith.select %43, %56, %59 : vector<16x128xi1>, vector<16x128xf32>
    %61 = vector.broadcast %31 : f32 to vector<16x128xf32>
    %62 = arith.mulf %60, %61 : vector<16x128xf32>
    %63 = vector.broadcast %24 : f32 to vector<16x128xf32>
    %64 = arith.addf %62, %63 : vector<16x128xf32>
    %65 = vector.broadcast %24 : f32 to vector<16x128xf32>
    %66 = arith.subf %9, %65 : vector<16x128xf32>
    %cst_17 = arith.constant 5.000000e-01 : f32
    %67 = arith.mulf %cst_17, %31 : f32
    %68 = vector.broadcast %67 : f32 to vector<16x128xf32>
    %69 = arith.addf %66, %68 : vector<16x128xf32>
    %70 = vector.broadcast %31 : f32 to vector<16x128xf32>
    %71 = arith.divf %69, %70 : vector<16x128xf32>
    %72 = math.floor %71 : vector<16x128xf32>
    %c64_i32_18 = arith.constant 64 : i32
    %73 = tpu.dynamic_rotate %72 by %c64_i32_18 dim 1 : vector<16x128xf32>, i32 -> vector<16x128xf32>
    %74 = tpu.iota {dimensions = array<i32: 1>} : vector<16x128xi32>
    %c64_i32_19 = arith.constant 64 : i32
    %75 = vector.broadcast %c64_i32_19 : i32 to vector<16x128xi32>
    %76 = arith.cmpi slt, %74, %75 : vector<16x128xi32>
    %77 = arith.select %76, %72, %73 : vector<16x128xi1>, vector<16x128xf32>
    %78 = arith.select %76, %73, %72 : vector<16x128xi1>, vector<16x128xf32>
    %cst_20 = arith.constant 1.600000e+01 : f32
    %79 = vector.broadcast %cst_20 : f32 to vector<16x128xf32>
    %80 = arith.mulf %77, %79 : vector<16x128xf32>
    %81 = arith.addf %80, %78 : vector<16x128xf32>
    %cst_21 = arith.constant 2.560000e+02 : f32
    %82 = vector.broadcast %cst_21 : f32 to vector<16x128xf32>
    %83 = arith.cmpf oge, %81, %82 : vector<16x128xf32>
    %cst_22 = arith.constant 2.560000e+02 : f32
    %84 = vector.broadcast %cst_22 : f32 to vector<16x128xf32>
    %85 = arith.subf %81, %84 : vector<16x128xf32>
    %86 = arith.select %83, %85, %81 : vector<16x128xi1>, vector<16x128xf32>
    %cst_23 = arith.constant 1.600000e+01 : f32
    %87 = vector.broadcast %cst_23 : f32 to vector<16x128xf32>
    %88 = arith.divf %86, %87 : vector<16x128xf32>
    %89 = math.floor %88 : vector<16x128xf32>
    %cst_24 = arith.constant 1.600000e+01 : f32
    %90 = vector.broadcast %cst_24 : f32 to vector<16x128xf32>
    %91 = arith.mulf %89, %90 : vector<16x128xf32>
    %92 = arith.subf %86, %91 : vector<16x128xf32>
    %93 = arith.select %76, %89, %92 : vector<16x128xi1>, vector<16x128xf32>
    %94 = vector.broadcast %31 : f32 to vector<16x128xf32>
    %95 = arith.mulf %93, %94 : vector<16x128xf32>
    %96 = vector.broadcast %24 : f32 to vector<16x128xf32>
    %97 = arith.addf %95, %96 : vector<16x128xf32>
    %98 = vector.shape_cast %7 : vector<16x128xf32> to vector<1x16x128xf32>
    %cst_25 = arith.constant dense<0x7F800000> : vector<1xf32>
    %99 = vector.multi_reduction <minimumf>, %98, %cst_25 [1, 2] : vector<1x16x128xf32> to vector<1xf32>
    %100 = vector.shape_cast %99 : vector<1xf32> to vector<1x1x1xf32>
    %101 = vector.extract %100[0, 0, 0] : f32 from vector<1x1x1xf32>
    %102 = vector.shape_cast %7 : vector<16x128xf32> to vector<1x16x128xf32>
    %cst_26 = arith.constant dense<0xFF800000> : vector<1xf32>
    %103 = vector.multi_reduction <maximumf>, %102, %cst_26 [1, 2] : vector<1x16x128xf32> to vector<1xf32>
    %104 = vector.shape_cast %103 : vector<1xf32> to vector<1x1x1xf32>
    %105 = vector.extract %104[0, 0, 0] : f32 from vector<1x1x1xf32>
    %106 = vector.shape_cast %10 : vector<16x128xf32> to vector<1x16x128xf32>
    %cst_27 = arith.constant dense<0x7F800000> : vector<1xf32>
    %107 = vector.multi_reduction <minimumf>, %106, %cst_27 [1, 2] : vector<1x16x128xf32> to vector<1xf32>
    %108 = vector.shape_cast %107 : vector<1xf32> to vector<1x1x1xf32>
    %109 = vector.extract %108[0, 0, 0] : f32 from vector<1x1x1xf32>
    %110 = arith.minimumf %101, %109 : f32
    %111 = vector.shape_cast %10 : vector<16x128xf32> to vector<1x16x128xf32>
    %cst_28 = arith.constant dense<0xFF800000> : vector<1xf32>
    %112 = vector.multi_reduction <maximumf>, %111, %cst_28 [1, 2] : vector<1x16x128xf32> to vector<1xf32>
    %113 = vector.shape_cast %112 : vector<1xf32> to vector<1x1x1xf32>
    %114 = vector.extract %113[0, 0, 0] : f32 from vector<1x1x1xf32>
    %115 = arith.maximumf %105, %114 : f32
    %116 = arith.subf %115, %110 : f32
    %cst_29 = arith.constant 1.600000e+01 : f32
    %117 = arith.divf %116, %cst_29 : f32
    %118 = vector.broadcast %110 : f32 to vector<16x128xf32>
    %119 = arith.subf %7, %118 : vector<16x128xf32>
    %cst_30 = arith.constant 5.000000e-01 : f32
    %120 = arith.mulf %cst_30, %117 : f32
    %121 = vector.broadcast %120 : f32 to vector<16x128xf32>
    %122 = arith.addf %119, %121 : vector<16x128xf32>
    %123 = vector.broadcast %117 : f32 to vector<16x128xf32>
    %124 = arith.divf %122, %123 : vector<16x128xf32>
    %125 = math.floor %124 : vector<16x128xf32>
    %c64_i32_31 = arith.constant 64 : i32
    %126 = tpu.dynamic_rotate %125 by %c64_i32_31 dim 1 : vector<16x128xf32>, i32 -> vector<16x128xf32>
    %127 = tpu.iota {dimensions = array<i32: 1>} : vector<16x128xi32>
    %c64_i32_32 = arith.constant 64 : i32
    %128 = vector.broadcast %c64_i32_32 : i32 to vector<16x128xi32>
    %129 = arith.cmpi slt, %127, %128 : vector<16x128xi32>
    %130 = arith.select %129, %125, %126 : vector<16x128xi1>, vector<16x128xf32>
    %131 = arith.select %129, %126, %125 : vector<16x128xi1>, vector<16x128xf32>
    %cst_33 = arith.constant 1.600000e+01 : f32
    %132 = vector.broadcast %cst_33 : f32 to vector<16x128xf32>
    %133 = arith.mulf %130, %132 : vector<16x128xf32>
    %134 = arith.addf %133, %131 : vector<16x128xf32>
    %cst_34 = arith.constant 2.560000e+02 : f32
    %135 = vector.broadcast %cst_34 : f32 to vector<16x128xf32>
    %136 = arith.cmpf oge, %134, %135 : vector<16x128xf32>
    %cst_35 = arith.constant 2.560000e+02 : f32
    %137 = vector.broadcast %cst_35 : f32 to vector<16x128xf32>
    %138 = arith.subf %134, %137 : vector<16x128xf32>
    %139 = arith.select %136, %138, %134 : vector<16x128xi1>, vector<16x128xf32>
    %cst_36 = arith.constant 1.600000e+01 : f32
    %140 = vector.broadcast %cst_36 : f32 to vector<16x128xf32>
    %141 = arith.divf %139, %140 : vector<16x128xf32>
    %142 = math.floor %141 : vector<16x128xf32>
    %cst_37 = arith.constant 1.600000e+01 : f32
    %143 = vector.broadcast %cst_37 : f32 to vector<16x128xf32>
    %144 = arith.mulf %142, %143 : vector<16x128xf32>
    %145 = arith.subf %139, %144 : vector<16x128xf32>
    %146 = arith.select %129, %142, %145 : vector<16x128xi1>, vector<16x128xf32>
    %147 = vector.broadcast %117 : f32 to vector<16x128xf32>
    %148 = arith.mulf %146, %147 : vector<16x128xf32>
    %149 = vector.broadcast %110 : f32 to vector<16x128xf32>
    %150 = arith.addf %148, %149 : vector<16x128xf32>
    %151 = vector.broadcast %110 : f32 to vector<16x128xf32>
    %152 = arith.subf %10, %151 : vector<16x128xf32>
    %cst_38 = arith.constant 5.000000e-01 : f32
    %153 = arith.mulf %cst_38, %117 : f32
    %154 = vector.broadcast %153 : f32 to vector<16x128xf32>
    %155 = arith.addf %152, %154 : vector<16x128xf32>
    %156 = vector.broadcast %117 : f32 to vector<16x128xf32>
    %157 = arith.divf %155, %156 : vector<16x128xf32>
    %158 = math.floor %157 : vector<16x128xf32>
    %c64_i32_39 = arith.constant 64 : i32
    %159 = tpu.dynamic_rotate %158 by %c64_i32_39 dim 1 : vector<16x128xf32>, i32 -> vector<16x128xf32>
    %160 = tpu.iota {dimensions = array<i32: 1>} : vector<16x128xi32>
    %c64_i32_40 = arith.constant 64 : i32
    %161 = vector.broadcast %c64_i32_40 : i32 to vector<16x128xi32>
    %162 = arith.cmpi slt, %160, %161 : vector<16x128xi32>
    %163 = arith.select %162, %158, %159 : vector<16x128xi1>, vector<16x128xf32>
    %164 = arith.select %162, %159, %158 : vector<16x128xi1>, vector<16x128xf32>
    %cst_41 = arith.constant 1.600000e+01 : f32
    %165 = vector.broadcast %cst_41 : f32 to vector<16x128xf32>
    %166 = arith.mulf %163, %165 : vector<16x128xf32>
    %167 = arith.addf %166, %164 : vector<16x128xf32>
    %cst_42 = arith.constant 2.560000e+02 : f32
    %168 = vector.broadcast %cst_42 : f32 to vector<16x128xf32>
    %169 = arith.cmpf oge, %167, %168 : vector<16x128xf32>
    %cst_43 = arith.constant 2.560000e+02 : f32
    %170 = vector.broadcast %cst_43 : f32 to vector<16x128xf32>
    %171 = arith.subf %167, %170 : vector<16x128xf32>
    %172 = arith.select %169, %171, %167 : vector<16x128xi1>, vector<16x128xf32>
    %cst_44 = arith.constant 1.600000e+01 : f32
    %173 = vector.broadcast %cst_44 : f32 to vector<16x128xf32>
    %174 = arith.divf %172, %173 : vector<16x128xf32>
    %175 = math.floor %174 : vector<16x128xf32>
    %cst_45 = arith.constant 1.600000e+01 : f32
    %176 = vector.broadcast %cst_45 : f32 to vector<16x128xf32>
    %177 = arith.mulf %175, %176 : vector<16x128xf32>
    %178 = arith.subf %172, %177 : vector<16x128xf32>
    %179 = arith.select %162, %175, %178 : vector<16x128xi1>, vector<16x128xf32>
    %180 = vector.broadcast %117 : f32 to vector<16x128xf32>
    %181 = arith.mulf %179, %180 : vector<16x128xf32>
    %182 = vector.broadcast %110 : f32 to vector<16x128xf32>
    %183 = arith.addf %181, %182 : vector<16x128xf32>
    %184 = vector.shape_cast %8 : vector<16x128xf32> to vector<1x16x128xf32>
    %cst_46 = arith.constant dense<0x7F800000> : vector<1xf32>
    %185 = vector.multi_reduction <minimumf>, %184, %cst_46 [1, 2] : vector<1x16x128xf32> to vector<1xf32>
    %186 = vector.shape_cast %185 : vector<1xf32> to vector<1x1x1xf32>
    %187 = vector.extract %186[0, 0, 0] : f32 from vector<1x1x1xf32>
    %188 = vector.shape_cast %8 : vector<16x128xf32> to vector<1x16x128xf32>
    %cst_47 = arith.constant dense<0xFF800000> : vector<1xf32>
    %189 = vector.multi_reduction <maximumf>, %188, %cst_47 [1, 2] : vector<1x16x128xf32> to vector<1xf32>
    %190 = vector.shape_cast %189 : vector<1xf32> to vector<1x1x1xf32>
    %191 = vector.extract %190[0, 0, 0] : f32 from vector<1x1x1xf32>
    %192 = vector.shape_cast %11 : vector<16x128xf32> to vector<1x16x128xf32>
    %cst_48 = arith.constant dense<0x7F800000> : vector<1xf32>
    %193 = vector.multi_reduction <minimumf>, %192, %cst_48 [1, 2] : vector<1x16x128xf32> to vector<1xf32>
    %194 = vector.shape_cast %193 : vector<1xf32> to vector<1x1x1xf32>
    %195 = vector.extract %194[0, 0, 0] : f32 from vector<1x1x1xf32>
    %196 = arith.minimumf %187, %195 : f32
    %197 = vector.shape_cast %11 : vector<16x128xf32> to vector<1x16x128xf32>
    %cst_49 = arith.constant dense<0xFF800000> : vector<1xf32>
    %198 = vector.multi_reduction <maximumf>, %197, %cst_49 [1, 2] : vector<1x16x128xf32> to vector<1xf32>
    %199 = vector.shape_cast %198 : vector<1xf32> to vector<1x1x1xf32>
    %200 = vector.extract %199[0, 0, 0] : f32 from vector<1x1x1xf32>
    %201 = arith.maximumf %191, %200 : f32
    %202 = arith.subf %201, %196 : f32
    %cst_50 = arith.constant 1.600000e+01 : f32
    %203 = arith.divf %202, %cst_50 : f32
    %204 = vector.broadcast %196 : f32 to vector<16x128xf32>
    %205 = arith.subf %8, %204 : vector<16x128xf32>
    %cst_51 = arith.constant 5.000000e-01 : f32
    %206 = arith.mulf %cst_51, %203 : f32
    %207 = vector.broadcast %206 : f32 to vector<16x128xf32>
    %208 = arith.addf %205, %207 : vector<16x128xf32>
    %209 = vector.broadcast %203 : f32 to vector<16x128xf32>
    %210 = arith.divf %208, %209 : vector<16x128xf32>
    %211 = math.floor %210 : vector<16x128xf32>
    %c64_i32_52 = arith.constant 64 : i32
    %212 = tpu.dynamic_rotate %211 by %c64_i32_52 dim 1 : vector<16x128xf32>, i32 -> vector<16x128xf32>
    %213 = tpu.iota {dimensions = array<i32: 1>} : vector<16x128xi32>
    %c64_i32_53 = arith.constant 64 : i32
    %214 = vector.broadcast %c64_i32_53 : i32 to vector<16x128xi32>
    %215 = arith.cmpi slt, %213, %214 : vector<16x128xi32>
    %216 = arith.select %215, %211, %212 : vector<16x128xi1>, vector<16x128xf32>
    %217 = arith.select %215, %212, %211 : vector<16x128xi1>, vector<16x128xf32>
    %cst_54 = arith.constant 1.600000e+01 : f32
    %218 = vector.broadcast %cst_54 : f32 to vector<16x128xf32>
    %219 = arith.mulf %216, %218 : vector<16x128xf32>
    %220 = arith.addf %219, %217 : vector<16x128xf32>
    %cst_55 = arith.constant 2.560000e+02 : f32
    %221 = vector.broadcast %cst_55 : f32 to vector<16x128xf32>
    %222 = arith.cmpf oge, %220, %221 : vector<16x128xf32>
    %cst_56 = arith.constant 2.560000e+02 : f32
    %223 = vector.broadcast %cst_56 : f32 to vector<16x128xf32>
    %224 = arith.subf %220, %223 : vector<16x128xf32>
    %225 = arith.select %222, %224, %220 : vector<16x128xi1>, vector<16x128xf32>
    %cst_57 = arith.constant 1.600000e+01 : f32
    %226 = vector.broadcast %cst_57 : f32 to vector<16x128xf32>
    %227 = arith.divf %225, %226 : vector<16x128xf32>
    %228 = math.floor %227 : vector<16x128xf32>
    %cst_58 = arith.constant 1.600000e+01 : f32
    %229 = vector.broadcast %cst_58 : f32 to vector<16x128xf32>
    %230 = arith.mulf %228, %229 : vector<16x128xf32>
    %231 = arith.subf %225, %230 : vector<16x128xf32>
    %232 = arith.select %215, %228, %231 : vector<16x128xi1>, vector<16x128xf32>
    %233 = vector.broadcast %203 : f32 to vector<16x128xf32>
    %234 = arith.mulf %232, %233 : vector<16x128xf32>
    %235 = vector.broadcast %196 : f32 to vector<16x128xf32>
    %236 = arith.addf %234, %235 : vector<16x128xf32>
    %237 = vector.broadcast %196 : f32 to vector<16x128xf32>
    %238 = arith.subf %11, %237 : vector<16x128xf32>
    %cst_59 = arith.constant 5.000000e-01 : f32
    %239 = arith.mulf %cst_59, %203 : f32
    %240 = vector.broadcast %239 : f32 to vector<16x128xf32>
    %241 = arith.addf %238, %240 : vector<16x128xf32>
    %242 = vector.broadcast %203 : f32 to vector<16x128xf32>
    %243 = arith.divf %241, %242 : vector<16x128xf32>
    %244 = math.floor %243 : vector<16x128xf32>
    %c64_i32_60 = arith.constant 64 : i32
    %245 = tpu.dynamic_rotate %244 by %c64_i32_60 dim 1 : vector<16x128xf32>, i32 -> vector<16x128xf32>
    %246 = tpu.iota {dimensions = array<i32: 1>} : vector<16x128xi32>
    %c64_i32_61 = arith.constant 64 : i32
    %247 = vector.broadcast %c64_i32_61 : i32 to vector<16x128xi32>
    %248 = arith.cmpi slt, %246, %247 : vector<16x128xi32>
    %249 = arith.select %248, %244, %245 : vector<16x128xi1>, vector<16x128xf32>
    %250 = arith.select %248, %245, %244 : vector<16x128xi1>, vector<16x128xf32>
    %cst_62 = arith.constant 1.600000e+01 : f32
    %251 = vector.broadcast %cst_62 : f32 to vector<16x128xf32>
    %252 = arith.mulf %249, %251 : vector<16x128xf32>
    %253 = arith.addf %252, %250 : vector<16x128xf32>
    %cst_63 = arith.constant 2.560000e+02 : f32
    %254 = vector.broadcast %cst_63 : f32 to vector<16x128xf32>
    %255 = arith.cmpf oge, %253, %254 : vector<16x128xf32>
    %cst_64 = arith.constant 2.560000e+02 : f32
    %256 = vector.broadcast %cst_64 : f32 to vector<16x128xf32>
    %257 = arith.subf %253, %256 : vector<16x128xf32>
    %258 = arith.select %255, %257, %253 : vector<16x128xi1>, vector<16x128xf32>
    %cst_65 = arith.constant 1.600000e+01 : f32
    %259 = vector.broadcast %cst_65 : f32 to vector<16x128xf32>
    %260 = arith.divf %258, %259 : vector<16x128xf32>
    %261 = math.floor %260 : vector<16x128xf32>
    %cst_66 = arith.constant 1.600000e+01 : f32
    %262 = vector.broadcast %cst_66 : f32 to vector<16x128xf32>
    %263 = arith.mulf %261, %262 : vector<16x128xf32>
    %264 = arith.subf %258, %263 : vector<16x128xf32>
    %265 = arith.select %248, %261, %264 : vector<16x128xi1>, vector<16x128xf32>
    %266 = vector.broadcast %203 : f32 to vector<16x128xf32>
    %267 = arith.mulf %265, %266 : vector<16x128xf32>
    %268 = vector.broadcast %196 : f32 to vector<16x128xf32>
    %269 = arith.addf %267, %268 : vector<16x128xf32>
    %270 = tpu.iota {dimensions = array<i32: 0>} : vector<8x8xi32>
    %271 = tpu.iota {dimensions = array<i32: 1>} : vector<8x8xi32>
    %272 = arith.cmpi sle, %271, %270 : vector<8x8xi32>
    %273 = vector.extract_strided_slice %64 {offsets = [0, 0], sizes = [8, 128], strides = [1, 1]} : vector<16x128xf32> to vector<8x128xf32>
    %274 = arith.truncf %273 : vector<8x128xf32> to vector<8x128xbf16>
    %275 = vector.extract_strided_slice %150 {offsets = [0, 0], sizes = [8, 128], strides = [1, 1]} : vector<16x128xf32> to vector<8x128xf32>
    %276 = arith.truncf %275 : vector<8x128xf32> to vector<8x128xbf16>
    %277 = vector.extract_strided_slice %236 {offsets = [0, 0], sizes = [8, 128], strides = [1, 1]} : vector<16x128xf32> to vector<8x128xf32>
    %278 = arith.truncf %277 : vector<8x128xf32> to vector<8x128xbf16>
    %cst_67 = arith.constant dense<0.000000e+00> : vector<8x8xf32>
    %279 = tpu.matmul %274, %276, %cst_67 {dimension_numbers = #tpu.dot_dimension_numbers<[1], [1], [0], [0], [0, 0, 1, 0], [], []>} : vector<8x128xbf16>, vector<8x128xbf16>, vector<8x8xf32> -> vector<8x8xf32>
    %cst_68 = arith.constant 0.0883883461 : f32
    %280 = vector.broadcast %cst_68 : f32 to vector<8x8xf32>
    %281 = arith.mulf %279, %280 : vector<8x8xf32>
    %cst_69 = arith.constant 0xFF800000 : f32
    %282 = vector.broadcast %cst_69 : f32 to vector<8x8xf32>
    %283 = arith.select %272, %281, %282 : vector<8x8xi1>, vector<8x8xf32>
    %cst_70 = arith.constant dense<0xFF800000> : vector<8xf32>
    %284 = vector.multi_reduction <maximumf>, %283, %cst_70 [1] : vector<8x8xf32> to vector<8xf32>
    %285 = vector.shape_cast %284 : vector<8xf32> to vector<8x1xf32>
    %286 = vector.broadcast %285 : vector<8x1xf32> to vector<8x8xf32>
    %287 = arith.subf %283, %286 : vector<8x8xf32>
    %288 = math.exp %287 : vector<8x8xf32>
    %cst_71 = arith.constant dense<0.000000e+00> : vector<8xf32>
    %289 = vector.multi_reduction <add>, %288, %cst_71 [1] : vector<8x8xf32> to vector<8xf32>
    %290 = vector.shape_cast %289 : vector<8xf32> to vector<8x1xf32>
    %291 = arith.truncf %288 : vector<8x8xf32> to vector<8x8xbf16>
    %cst_72 = arith.constant dense<0.000000e+00> : vector<8x128xf32>
    %292 = tpu.matmul %291, %278, %cst_72 {dimension_numbers = #tpu.dot_dimension_numbers<[1], [0], [0], [1], [0, 0, 1, 1], [], []>} : vector<8x8xbf16>, vector<8x128xbf16>, vector<8x128xf32> -> vector<8x128xf32>
    %293 = tpu.reciprocal %290 {approx = true} : vector<8x1xf32> -> vector<8x1xf32>
    %294 = vector.broadcast %293 : vector<8x1xf32> to vector<8x128xf32>
    %295 = arith.mulf %292, %294 : vector<8x128xf32>
    %296 = vector.extract_strided_slice %97 {offsets = [0, 0], sizes = [8, 128], strides = [1, 1]} : vector<16x128xf32> to vector<8x128xf32>
    %297 = arith.truncf %296 : vector<8x128xf32> to vector<8x128xbf16>
    %298 = vector.extract_strided_slice %183 {offsets = [0, 0], sizes = [8, 128], strides = [1, 1]} : vector<16x128xf32> to vector<8x128xf32>
    %299 = arith.truncf %298 : vector<8x128xf32> to vector<8x128xbf16>
    %300 = vector.extract_strided_slice %269 {offsets = [0, 0], sizes = [8, 128], strides = [1, 1]} : vector<16x128xf32> to vector<8x128xf32>
    %301 = arith.truncf %300 : vector<8x128xf32> to vector<8x128xbf16>
    %cst_73 = arith.constant dense<0.000000e+00> : vector<8x8xf32>
    %302 = tpu.matmul %297, %299, %cst_73 {dimension_numbers = #tpu.dot_dimension_numbers<[1], [1], [0], [0], [0, 0, 1, 0], [], []>} : vector<8x128xbf16>, vector<8x128xbf16>, vector<8x8xf32> -> vector<8x8xf32>
    %cst_74 = arith.constant 0.0883883461 : f32
    %303 = vector.broadcast %cst_74 : f32 to vector<8x8xf32>
    %304 = arith.mulf %302, %303 : vector<8x8xf32>
    %cst_75 = arith.constant 0xFF800000 : f32
    %305 = vector.broadcast %cst_75 : f32 to vector<8x8xf32>
    %306 = arith.select %272, %304, %305 : vector<8x8xi1>, vector<8x8xf32>
    %cst_76 = arith.constant dense<0xFF800000> : vector<8xf32>
    %307 = vector.multi_reduction <maximumf>, %306, %cst_76 [1] : vector<8x8xf32> to vector<8xf32>
    %308 = vector.shape_cast %307 : vector<8xf32> to vector<8x1xf32>
    %309 = vector.broadcast %308 : vector<8x1xf32> to vector<8x8xf32>
    %310 = arith.subf %306, %309 : vector<8x8xf32>
    %311 = math.exp %310 : vector<8x8xf32>
    %cst_77 = arith.constant dense<0.000000e+00> : vector<8xf32>
    %312 = vector.multi_reduction <add>, %311, %cst_77 [1] : vector<8x8xf32> to vector<8xf32>
    %313 = vector.shape_cast %312 : vector<8xf32> to vector<8x1xf32>
    %314 = arith.truncf %311 : vector<8x8xf32> to vector<8x8xbf16>
    %cst_78 = arith.constant dense<0.000000e+00> : vector<8x128xf32>
    %315 = tpu.matmul %314, %301, %cst_78 {dimension_numbers = #tpu.dot_dimension_numbers<[1], [0], [0], [1], [0, 0, 1, 1], [], []>} : vector<8x8xbf16>, vector<8x128xbf16>, vector<8x128xf32> -> vector<8x128xf32>
    %316 = tpu.reciprocal %313 {approx = true} : vector<8x1xf32> -> vector<8x1xf32>
    %317 = vector.broadcast %316 : vector<8x1xf32> to vector<8x128xf32>
    %318 = arith.mulf %315, %317 : vector<8x128xf32>
    %319 = tpu.concatenate %295, %318 in 1 : vector<8x128xf32>, vector<8x128xf32> -> vector<8x256xf32>
    %320 = vector.extract_strided_slice %64 {offsets = [8, 0], sizes = [8, 128], strides = [1, 1]} : vector<16x128xf32> to vector<8x128xf32>
    %321 = arith.truncf %320 : vector<8x128xf32> to vector<8x128xbf16>
    %322 = vector.extract_strided_slice %150 {offsets = [8, 0], sizes = [8, 128], strides = [1, 1]} : vector<16x128xf32> to vector<8x128xf32>
    %323 = arith.truncf %322 : vector<8x128xf32> to vector<8x128xbf16>
    %324 = vector.extract_strided_slice %236 {offsets = [8, 0], sizes = [8, 128], strides = [1, 1]} : vector<16x128xf32> to vector<8x128xf32>
    %325 = arith.truncf %324 : vector<8x128xf32> to vector<8x128xbf16>
    %cst_79 = arith.constant dense<0.000000e+00> : vector<8x8xf32>
    %326 = tpu.matmul %321, %323, %cst_79 {dimension_numbers = #tpu.dot_dimension_numbers<[1], [1], [0], [0], [0, 0, 1, 0], [], []>} : vector<8x128xbf16>, vector<8x128xbf16>, vector<8x8xf32> -> vector<8x8xf32>
    %cst_80 = arith.constant 0.0883883461 : f32
    %327 = vector.broadcast %cst_80 : f32 to vector<8x8xf32>
    %328 = arith.mulf %326, %327 : vector<8x8xf32>
    %cst_81 = arith.constant 0xFF800000 : f32
    %329 = vector.broadcast %cst_81 : f32 to vector<8x8xf32>
    %330 = arith.select %272, %328, %329 : vector<8x8xi1>, vector<8x8xf32>
    %cst_82 = arith.constant dense<0xFF800000> : vector<8xf32>
    %331 = vector.multi_reduction <maximumf>, %330, %cst_82 [1] : vector<8x8xf32> to vector<8xf32>
    %332 = vector.shape_cast %331 : vector<8xf32> to vector<8x1xf32>
    %333 = vector.broadcast %332 : vector<8x1xf32> to vector<8x8xf32>
    %334 = arith.subf %330, %333 : vector<8x8xf32>
    %335 = math.exp %334 : vector<8x8xf32>
    %cst_83 = arith.constant dense<0.000000e+00> : vector<8xf32>
    %336 = vector.multi_reduction <add>, %335, %cst_83 [1] : vector<8x8xf32> to vector<8xf32>
    %337 = vector.shape_cast %336 : vector<8xf32> to vector<8x1xf32>
    %338 = arith.truncf %335 : vector<8x8xf32> to vector<8x8xbf16>
    %cst_84 = arith.constant dense<0.000000e+00> : vector<8x128xf32>
    %339 = tpu.matmul %338, %325, %cst_84 {dimension_numbers = #tpu.dot_dimension_numbers<[1], [0], [0], [1], [0, 0, 1, 1], [], []>} : vector<8x8xbf16>, vector<8x128xbf16>, vector<8x128xf32> -> vector<8x128xf32>
    %340 = tpu.reciprocal %337 {approx = true} : vector<8x1xf32> -> vector<8x1xf32>
    %341 = vector.broadcast %340 : vector<8x1xf32> to vector<8x128xf32>
    %342 = arith.mulf %339, %341 : vector<8x128xf32>
    %343 = vector.extract_strided_slice %97 {offsets = [8, 0], sizes = [8, 128], strides = [1, 1]} : vector<16x128xf32> to vector<8x128xf32>
    %344 = arith.truncf %343 : vector<8x128xf32> to vector<8x128xbf16>
    %345 = vector.extract_strided_slice %183 {offsets = [8, 0], sizes = [8, 128], strides = [1, 1]} : vector<16x128xf32> to vector<8x128xf32>
    %346 = arith.truncf %345 : vector<8x128xf32> to vector<8x128xbf16>
    %347 = vector.extract_strided_slice %269 {offsets = [8, 0], sizes = [8, 128], strides = [1, 1]} : vector<16x128xf32> to vector<8x128xf32>
    %348 = arith.truncf %347 : vector<8x128xf32> to vector<8x128xbf16>
    %cst_85 = arith.constant dense<0.000000e+00> : vector<8x8xf32>
    %349 = tpu.matmul %344, %346, %cst_85 {dimension_numbers = #tpu.dot_dimension_numbers<[1], [1], [0], [0], [0, 0, 1, 0], [], []>} : vector<8x128xbf16>, vector<8x128xbf16>, vector<8x8xf32> -> vector<8x8xf32>
    %cst_86 = arith.constant 0.0883883461 : f32
    %350 = vector.broadcast %cst_86 : f32 to vector<8x8xf32>
    %351 = arith.mulf %349, %350 : vector<8x8xf32>
    %cst_87 = arith.constant 0xFF800000 : f32
    %352 = vector.broadcast %cst_87 : f32 to vector<8x8xf32>
    %353 = arith.select %272, %351, %352 : vector<8x8xi1>, vector<8x8xf32>
    %cst_88 = arith.constant dense<0xFF800000> : vector<8xf32>
    %354 = vector.multi_reduction <maximumf>, %353, %cst_88 [1] : vector<8x8xf32> to vector<8xf32>
    %355 = vector.shape_cast %354 : vector<8xf32> to vector<8x1xf32>
    %356 = vector.broadcast %355 : vector<8x1xf32> to vector<8x8xf32>
    %357 = arith.subf %353, %356 : vector<8x8xf32>
    %358 = math.exp %357 : vector<8x8xf32>
    %cst_89 = arith.constant dense<0.000000e+00> : vector<8xf32>
    %359 = vector.multi_reduction <add>, %358, %cst_89 [1] : vector<8x8xf32> to vector<8xf32>
    %360 = vector.shape_cast %359 : vector<8xf32> to vector<8x1xf32>
    %361 = arith.truncf %358 : vector<8x8xf32> to vector<8x8xbf16>
    %cst_90 = arith.constant dense<0.000000e+00> : vector<8x128xf32>
    %362 = tpu.matmul %361, %348, %cst_90 {dimension_numbers = #tpu.dot_dimension_numbers<[1], [0], [0], [1], [0, 0, 1, 1], [], []>} : vector<8x8xbf16>, vector<8x128xbf16>, vector<8x128xf32> -> vector<8x128xf32>
    %363 = tpu.reciprocal %360 {approx = true} : vector<8x1xf32> -> vector<8x1xf32>
    %364 = vector.broadcast %363 : vector<8x1xf32> to vector<8x128xf32>
    %365 = arith.mulf %362, %364 : vector<8x128xf32>
    %366 = tpu.concatenate %342, %365 in 1 : vector<8x128xf32>, vector<8x128xf32> -> vector<8x256xf32>
    %367 = tpu.concatenate %319, %366 in 0 : vector<8x256xf32>, vector<8x256xf32> -> vector<16x256xf32>
    %368 = vector.shape_cast %367 : vector<16x256xf32> to vector<1x16x256xf32>
    %cst_91 = arith.constant dense<0x7F800000> : vector<1xf32>
    %369 = vector.multi_reduction <minimumf>, %368, %cst_91 [1, 2] : vector<1x16x256xf32> to vector<1xf32>
    %370 = vector.shape_cast %369 : vector<1xf32> to vector<1x1x1xf32>
    %371 = vector.extract %370[0, 0, 0] : f32 from vector<1x1x1xf32>
    %372 = vector.shape_cast %367 : vector<16x256xf32> to vector<1x16x256xf32>
    %cst_92 = arith.constant dense<0xFF800000> : vector<1xf32>
    %373 = vector.multi_reduction <maximumf>, %372, %cst_92 [1, 2] : vector<1x16x256xf32> to vector<1xf32>
    %374 = vector.shape_cast %373 : vector<1xf32> to vector<1x1x1xf32>
    %375 = vector.extract %374[0, 0, 0] : f32 from vector<1x1x1xf32>
    %376 = arith.subf %375, %371 : f32
    %cst_93 = arith.constant 1.600000e+01 : f32
    %377 = arith.divf %376, %cst_93 : f32
    %378 = vector.broadcast %371 : f32 to vector<16x256xf32>
    %379 = arith.subf %367, %378 : vector<16x256xf32>
    %cst_94 = arith.constant 5.000000e-01 : f32
    %380 = arith.mulf %cst_94, %377 : f32
    %381 = vector.broadcast %380 : f32 to vector<16x256xf32>
    %382 = arith.addf %379, %381 : vector<16x256xf32>
    %383 = vector.broadcast %377 : f32 to vector<16x256xf32>
    %384 = arith.divf %382, %383 : vector<16x256xf32>
    %385 = math.floor %384 : vector<16x256xf32>
    %c128_i32 = arith.constant 128 : i32
    %386 = tpu.dynamic_rotate %385 by %c128_i32 dim 1 : vector<16x256xf32>, i32 -> vector<16x256xf32>
    %387 = tpu.iota {dimensions = array<i32: 1>} : vector<16x256xi32>
    %c128_i32_95 = arith.constant 128 : i32
    %388 = vector.broadcast %c128_i32_95 : i32 to vector<16x256xi32>
    %389 = arith.cmpi slt, %387, %388 : vector<16x256xi32>
    %390 = arith.select %389, %385, %386 : vector<16x256xi1>, vector<16x256xf32>
    %391 = arith.select %389, %386, %385 : vector<16x256xi1>, vector<16x256xf32>
    %cst_96 = arith.constant 1.600000e+01 : f32
    %392 = vector.broadcast %cst_96 : f32 to vector<16x256xf32>
    %393 = arith.mulf %390, %392 : vector<16x256xf32>
    %394 = arith.addf %393, %391 : vector<16x256xf32>
    %cst_97 = arith.constant 2.560000e+02 : f32
    %395 = vector.broadcast %cst_97 : f32 to vector<16x256xf32>
    %396 = arith.cmpf oge, %394, %395 : vector<16x256xf32>
    %cst_98 = arith.constant 2.560000e+02 : f32
    %397 = vector.broadcast %cst_98 : f32 to vector<16x256xf32>
    %398 = arith.subf %394, %397 : vector<16x256xf32>
    %399 = arith.select %396, %398, %394 : vector<16x256xi1>, vector<16x256xf32>
    %cst_99 = arith.constant 1.600000e+01 : f32
    %400 = vector.broadcast %cst_99 : f32 to vector<16x256xf32>
    %401 = arith.divf %399, %400 : vector<16x256xf32>
    %402 = math.floor %401 : vector<16x256xf32>
    %cst_100 = arith.constant 1.600000e+01 : f32
    %403 = vector.broadcast %cst_100 : f32 to vector<16x256xf32>
    %404 = arith.mulf %402, %403 : vector<16x256xf32>
    %405 = arith.subf %399, %404 : vector<16x256xf32>
    %406 = arith.select %389, %402, %405 : vector<16x256xi1>, vector<16x256xf32>
    %407 = vector.broadcast %377 : f32 to vector<16x256xf32>
    %408 = arith.mulf %406, %407 : vector<16x256xf32>
    %409 = vector.broadcast %371 : f32 to vector<16x256xf32>
    %410 = arith.addf %408, %409 : vector<16x256xf32>
    %411 = arith.truncf %410 : vector<16x256xf32> to vector<16x256xbf16>
    %c0_101 = arith.constant 0 : index
    %c0_102 = arith.constant 0 : index
    %412 = vector.load %arg3[%c0_101, %c0_102] : memref<256x256xbf16, #tpu.memory_space<vmem>>, vector<256x256xbf16>
    %cst_103 = arith.constant dense<0.000000e+00> : vector<16x256xf32>
    %413 = tpu.matmul %411, %412, %cst_103 {dimension_numbers = #tpu.dot_dimension_numbers<[1], [1], [0], [0], [0, 0, 1, 0], [], []>} : vector<16x256xbf16>, vector<256x256xbf16>, vector<16x256xf32> -> vector<16x256xf32>
    %c0_104 = arith.constant 0 : index
    %c0_105 = arith.constant 0 : index
    %414 = vector.load %arg4[%c0_104, %c0_105] : memref<16x256xf32, #tpu.memory_space<vmem>>, vector<16x256xf32>
    tpu.vector_store %arg4[%c0_104, %c0_105], %413 {strides = array<i32>} : memref<16x256xf32, #tpu.memory_space<vmem>>, vector<16x256xf32>,
    return
  }
}

</mosaic_0001>

<llo_original>
// kernel: attention_forward.1
$region0: #{attention_forward.1}
  #allocation0 [shape = 'u32[]', space=smem, size = 0x4, offset = 0x4, fixed_abs, tag = 'smem constant byte address 0x4 - core index']
  #allocation1 [shape = 'u32[72,128]{1,0:T(1,128)}', space=vmem, size = 0x9000, scoped, tag = 'internal scratch']
  %s0 = inlined_call_operand.vmem [shape: bf16[16,256], index: 0, kind: input, shape index: {}]
  %s1 = inlined_call_operand.hbm [shape: bf16[768,256], index: 1, kind: input, shape index: {}]
  %s2 = inlined_call_operand.vmem [shape: f32[1,768], index: 2, kind: input, shape index: {}]
  %s3 = inlined_call_operand.hbm [shape: bf16[256,256], index: 3, kind: input, shape index: {}]
  %s4 = inlined_call_operand.vmem [shape: f32[16,256], index: 4, kind: output, shape index: {}]
  %s5 = sld [smem:[#allocation0]]
  $region34: #{attention_forward.1} parent=0
    _
  %s7 = ssub.s32 1, %s5
  %s8 = scalar_select 0, %s7, %s5
  $region1: #{attention_forward.1} parent=0
    #allocation2 [shape = 'u8[393216]{0}', space=vmem, size = 0x60000, scoped, tag = 'input window, operand 1, single buffered']
    #allocation3 [shape = 's32[1]{0}', space=sflag, size = 0x4, scoped, tag = 'scoped memory for attention_forward.1']
    #allocation4 [shape = 'u8[131072]{0}', space=vmem, size = 0x20000, scoped, tag = 'input window, operand 3, single buffered']
    #allocation5 [shape = 's32[1]{0}', space=sflag, size = 0x4, scoped, tag = 'scoped memory for attention_forward.1']
    %9 = vsyncpa [#allocation3], 0
    %10 = vsyncpa [#allocation5], 0
    // Predicated region
    $region2: #{attention_forward.1} parent=1 // pred_check
      _
    $region3: #{attention_forward.1} parent=1 // pred_check_branch
      %12 = sbr.rel (0) target = $region5
    $region4: #{attention_forward.1} parent=1 // pred_region
      _
    $region5: #{attention_forward.1} parent=1 // pred_fallthru
      _
    // Predicated region
    $region6: #{attention_forward.1} parent=1 // pred_check
      _
    $region7: #{attention_forward.1} parent=1 // pred_check_branch
      %14 = sbr.rel (0) target = $region9
    $region8: #{attention_forward.1} parent=1 // pred_region
      %16 = vsyncadd [#allocation3], 0
      %s17 = sshll.u32 %s1, 4
      %s18 = int_to_ptr.hbm [resolvable:$true] %s17
      %s19 = sshll.u32 [#allocation2], 4
      %s20 = int_to_ptr.vmem [resolvable:$true] %s19
      %25 = dma.hbm_to_vmem [thread:$0]  %s18, 12288, %s20, [#allocation3], 128, 128, 8
    $region9: #{attention_forward.1} parent=1 // pred_fallthru
      _
    // Predicated region
    $region10: #{attention_forward.1} parent=1 // pred_check
      _
    $region11: #{attention_forward.1} parent=1 // pred_check_branch
      %27 = sbr.rel (0) target = $region13
    $region12: #{attention_forward.1} parent=1 // pred_region
      _
    $region13: #{attention_forward.1} parent=1 // pred_fallthru
      _
    // Predicated region
    $region14: #{attention_forward.1} parent=1 // pred_check
      _
    $region15: #{attention_forward.1} parent=1 // pred_check_branch
      %29 = sbr.rel (0) target = $region17
    $region16: #{attention_forward.1} parent=1 // pred_region
      %31 = vsyncadd [#allocation5], 0
      %s32 = sshll.u32 %s3, 4
      %s33 = int_to_ptr.hbm [resolvable:$true] %s32
      %s34 = sshll.u32 [#allocation4], 4
      %s35 = int_to_ptr.vmem [resolvable:$true] %s34
      %40 = dma.hbm_to_vmem [thread:$0]  %s33, 4096, %s35, [#allocation5], 128, 128, 8
    $region17: #{attention_forward.1} parent=1 // pred_fallthru
      _
    // Predicated region
    $region18: #{attention_forward.1} parent=1 // pred_check
      _
    $region19: #{attention_forward.1} parent=1 // pred_check_branch
      %42 = sbr.rel (0) target = $region21
    $region20: #{attention_forward.1} parent=1 // pred_region
      %44 = dma.done [#allocation3], 12288
    $region21: #{attention_forward.1} parent=1 // pred_fallthru
      _
    // Predicated region
    $region22: #{attention_forward.1} parent=1 // pred_check
      _
    $region23: #{attention_forward.1} parent=1 // pred_check_branch
      %46 = sbr.rel (0) target = $region25
    $region24: #{attention_forward.1} parent=1 // pred_region
      %48 = dma.done [#allocation5], 4096
    $region25: #{attention_forward.1} parent=1 // pred_fallthru
      _
    %v50 = vld [vmem:[%s0] sm:$0xff]
    %v51 = vld [vmem:[%s0 + $0x8] sm:$0xff]
    %v52 = vld [vmem:[#allocation2] sm:$0xff]
    %v53 = vld [vmem:[#allocation2 + $0x8] sm:$0xff]
    %v54 = vld [vmem:[#allocation2 + $0x10] sm:$0xff]
    %v55 = vld [vmem:[#allocation2 + $0x18] sm:$0xff]
    %v56 = vld [vmem:[#allocation2 + $0x20] sm:$0xff]
    %v57 = vld [vmem:[#allocation2 + $0x28] sm:$0xff]
    %v58 = vld [vmem:[#allocation2 + $0x30] sm:$0xff]
    %v59 = vld [vmem:[#allocation2 + $0x38] sm:$0xff]
    %v60 = vld [vmem:[#allocation2 + $0x40] sm:$0xff]
    %v61 = vld [vmem:[#allocation2 + $0x48] sm:$0xff]
    %v62 = vld [vmem:[#allocation2 + $0x50] sm:$0xff]
    %v63 = vld [vmem:[#allocation2 + $0x58] sm:$0xff]
    %v64 = vld [vmem:[#allocation2 + $0x60] sm:$0xff]
    %v65 = vld [vmem:[#allocation2 + $0x68] sm:$0xff]
    %v66 = vld [vmem:[#allocation2 + $0x70] sm:$0xff]
    %v67 = vld [vmem:[#allocation2 + $0x78] sm:$0xff]
    %v68 = vld [vmem:[#allocation2 + $0x80] sm:$0xff]
    %v69 = vld [vmem:[#allocation2 + $0x88] sm:$0xff]
    %v70 = vld [vmem:[#allocation2 + $0x90] sm:$0xff]
    %v71 = vld [vmem:[#allocation2 + $0x98] sm:$0xff]
    %v72 = vld [vmem:[#allocation2 + $0xa0] sm:$0xff]
    %v73 = vld [vmem:[#allocation2 + $0xa8] sm:$0xff]
    %v74 = vld [vmem:[#allocation2 + $0xb0] sm:$0xff]
    %v75 = vld [vmem:[#allocation2 + $0xb8] sm:$0xff]
    %v76 = vld [vmem:[#allocation2 + $0xc0] sm:$0xff]
    %v77 = vld [vmem:[#allocation2 + $0xc8] sm:$0xff]
    %v78 = vld [vmem:[#allocation2 + $0xd0] sm:$0xff]
    %v79 = vld [vmem:[#allocation2 + $0xd8] sm:$0xff]
    %v80 = vld [vmem:[#allocation2 + $0xe0] sm:$0xff]
    %v81 = vld [vmem:[#allocation2 + $0xe8] sm:$0xff]
    %v82 = vld [vmem:[#allocation2 + $0xf0] sm:$0xff]
    %v83 = vld [vmem:[#allocation2 + $0xf8] sm:$0xff]
    %v84 = vld [vmem:[#allocation2 + $0x100] sm:$0xff]
    %v85 = vld [vmem:[#allocation2 + $0x108] sm:$0xff]
    %v86 = vld [vmem:[#allocation2 + $0x110] sm:$0xff]
    %v87 = vld [vmem:[#allocation2 + $0x118] sm:$0xff]
    %v88 = vld [vmem:[#allocation2 + $0x120] sm:$0xff]
    %v89 = vld [vmem:[#allocation2 + $0x128] sm:$0xff]
    %v90 = vld [vmem:[#allocation2 + $0x130] sm:$0xff]
    %v91 = vld [vmem:[#allocation2 + $0x138] sm:$0xff]
    %v92 = vld [vmem:[#allocation2 + $0x140] sm:$0xff]
    %v93 = vld [vmem:[#allocation2 + $0x148] sm:$0xff]
    %v94 = vld [vmem:[#allocation2 + $0x150] sm:$0xff]
    %v95 = vld [vmem:[#allocation2 + $0x158] sm:$0xff]
    %v96 = vld [vmem:[#allocation2 + $0x160] sm:$0xff]
    %v97 = vld [vmem:[#allocation2 + $0x168] sm:$0xff]
    %v98 = vld [vmem:[#allocation2 + $0x170] sm:$0xff]
    %v99 = vld [vmem:[#allocation2 + $0x178] sm:$0xff]
    %v100 = vld [vmem:[#allocation2 + $0x180] sm:$0xff]
    %v101 = vld [vmem:[#allocation2 + $0x188] sm:$0xff]
    %v102 = vld [vmem:[#allocation2 + $0x190] sm:$0xff]
    %v103 = vld [vmem:[#allocation2 + $0x198] sm:$0xff]
    %v104 = vld [vmem:[#allocation2 + $0x1a0] sm:$0xff]
    %v105 = vld [vmem:[#allocation2 + $0x1a8] sm:$0xff]
    %v106 = vld [vmem:[#allocation2 + $0x1b0] sm:$0xff]
    %v107 = vld [vmem:[#allocation2 + $0x1b8] sm:$0xff]
    %v108 = vld [vmem:[#allocation2 + $0x1c0] sm:$0xff]
    %v109 = vld [vmem:[#allocation2 + $0x1c8] sm:$0xff]
    %v110 = vld [vmem:[#allocation2 + $0x1d0] sm:$0xff]
    %v111 = vld [vmem:[#allocation2 + $0x1d8] sm:$0xff]
    %v112 = vld [vmem:[#allocation2 + $0x1e0] sm:$0xff]
    %v113 = vld [vmem:[#allocation2 + $0x1e8] sm:$0xff]
    %v114 = vld [vmem:[#allocation2 + $0x1f0] sm:$0xff]
    %v115 = vld [vmem:[#allocation2 + $0x1f8] sm:$0xff]
    %v116 = vld [vmem:[#allocation2 + $0x200] sm:$0xff]
    %v117 = vld [vmem:[#allocation2 + $0x208] sm:$0xff]
    %v118 = vld [vmem:[#allocation2 + $0x210] sm:$0xff]
    %v119 = vld [vmem:[#allocation2 + $0x218] sm:$0xff]
    %v120 = vld [vmem:[#allocation2 + $0x220] sm:$0xff]
    %v121 = vld [vmem:[#allocation2 + $0x228] sm:$0xff]
    %v122 = vld [vmem:[#allocation2 + $0x230] sm:$0xff]
    %v123 = vld [vmem:[#allocation2 + $0x238] sm:$0xff]
    %v124 = vld [vmem:[#allocation2 + $0x240] sm:$0xff]
    %v125 = vld [vmem:[#allocation2 + $0x248] sm:$0xff]
    %v126 = vld [vmem:[#allocation2 + $0x250] sm:$0xff]
    %v127 = vld [vmem:[#allocation2 + $0x258] sm:$0xff]
    %v128 = vld [vmem:[#allocation2 + $0x260] sm:$0xff]
    %v129 = vld [vmem:[#allocation2 + $0x268] sm:$0xff]
    %v130 = vld [vmem:[#allocation2 + $0x270] sm:$0xff]
    %v131 = vld [vmem:[#allocation2 + $0x278] sm:$0xff]
    %v132 = vld [vmem:[#allocation2 + $0x280] sm:$0xff]
    %v133 = vld [vmem:[#allocation2 + $0x288] sm:$0xff]
    %v134 = vld [vmem:[#allocation2 + $0x290] sm:$0xff]
    %v135 = vld [vmem:[#allocation2 + $0x298] sm:$0xff]
    %v136 = vld [vmem:[#allocation2 + $0x2a0] sm:$0xff]
    %v137 = vld [vmem:[#allocation2 + $0x2a8] sm:$0xff]
    %v138 = vld [vmem:[#allocation2 + $0x2b0] sm:$0xff]
    %v139 = vld [vmem:[#allocation2 + $0x2b8] sm:$0xff]
    %v140 = vld [vmem:[#allocation2 + $0x2c0] sm:$0xff]
    %v141 = vld [vmem:[#allocation2 + $0x2c8] sm:$0xff]
    %v142 = vld [vmem:[#allocation2 + $0x2d0] sm:$0xff]
    %v143 = vld [vmem:[#allocation2 + $0x2d8] sm:$0xff]
    %v144 = vld [vmem:[#allocation2 + $0x2e0] sm:$0xff]
    %v145 = vld [vmem:[#allocation2 + $0x2e8] sm:$0xff]
    %v146 = vld [vmem:[#allocation2 + $0x2f0] sm:$0xff]
    %v147 = vld [vmem:[#allocation2 + $0x2f8] sm:$0xff]
    %v148 = vld [vmem:[%s2] sm:$0x3f]
    %v150 = vperm.slane %v148, 0
    %v151 = vperm.slane %v148, 1
    %v152 = vperm.slane %v148, 2
    %v153 = vperm.slane %v148, 3
    %v154 = vperm.slane %v148, 4
    %v155 = vperm.slane %v148, 5
    %v164 = vunpack.c.l.b16 %v50
    %v165 = vunpack.c.h.b16 %v50
    %v166 = vunpack.c.l.b16 %v51
    %v167 = vunpack.c.h.b16 %v51
    %v168 = vpack.c.b16 %v166, %v164
    %v169 = vpack.c.b16 %v167, %v165
    %v268 = vunpack.c.l.b16 %v52
    %v269 = vunpack.c.h.b16 %v52
    %v270 = vunpack.c.l.b16 %v53
    %v271 = vunpack.c.h.b16 %v53
    %v272 = vunpack.c.l.b16 %v54
    %v273 = vunpack.c.h.b16 %v54
    %v274 = vunpack.c.l.b16 %v55
    %v275 = vunpack.c.h.b16 %v55
    %v276 = vunpack.c.l.b16 %v56
    %v277 = vunpack.c.h.b16 %v56
    %v278 = vunpack.c.l.b16 %v57
    %v279 = vunpack.c.h.b16 %v57
    %v280 = vunpack.c.l.b16 %v58
    %v281 = vunpack.c.h.b16 %v58
    %v282 = vunpack.c.l.b16 %v59
    %v283 = vunpack.c.h.b16 %v59
    %v284 = vunpack.c.l.b16 %v60
    %v285 = vunpack.c.h.b16 %v60
    %v286 = vunpack.c.l.b16 %v61
    %v287 = vunpack.c.h.b16 %v61
    %v288 = vunpack.c.l.b16 %v62
    %v289 = vunpack.c.h.b16 %v62
    %v290 = vunpack.c.l.b16 %v63
    %v291 = vunpack.c.h.b16 %v63
    %v292 = vunpack.c.l.b16 %v64
    %v293 = vunpack.c.h.b16 %v64
    %v294 = vunpack.c.l.b16 %v65
    %v295 = vunpack.c.h.b16 %v65
    %v296 = vunpack.c.l.b16 %v66
    %v297 = vunpack.c.h.b16 %v66
    %v298 = vunpack.c.l.b16 %v67
    %v299 = vunpack.c.h.b16 %v67
    %v300 = vunpack.c.l.b16 %v68
    %v301 = vunpack.c.h.b16 %v68
    %v302 = vunpack.c.l.b16 %v69
    %v303 = vunpack.c.h.b16 %v69
    %v304 = vunpack.c.l.b16 %v70
    %v305 = vunpack.c.h.b16 %v70
    %v306 = vunpack.c.l.b16 %v71
    %v307 = vunpack.c.h.b16 %v71
    %v308 = vunpack.c.l.b16 %v72
    %v309 = vunpack.c.h.b16 %v72
    %v310 = vunpack.c.l.b16 %v73
    %v311 = vunpack.c.h.b16 %v73
    %v312 = vunpack.c.l.b16 %v74
    %v313 = vunpack.c.h.b16 %v74
    %v314 = vunpack.c.l.b16 %v75
    %v315 = vunpack.c.h.b16 %v75
    %v316 = vunpack.c.l.b16 %v76
    %v317 = vunpack.c.h.b16 %v76
    %v318 = vunpack.c.l.b16 %v77
    %v319 = vunpack.c.h.b16 %v77
    %v320 = vunpack.c.l.b16 %v78
    %v321 = vunpack.c.h.b16 %v78
    %v322 = vunpack.c.l.b16 %v79
    %v323 = vunpack.c.h.b16 %v79
    %v324 = vunpack.c.l.b16 %v80
    %v325 = vunpack.c.h.b16 %v80
    %v326 = vunpack.c.l.b16 %v81
    %v327 = vunpack.c.h.b16 %v81
    %v328 = vunpack.c.l.b16 %v82
    %v329 = vunpack.c.h.b16 %v82
    %v330 = vunpack.c.l.b16 %v83
    %v331 = vunpack.c.h.b16 %v83
    %v332 = vunpack.c.l.b16 %v84
    %v333 = vunpack.c.h.b16 %v84
    %v334 = vunpack.c.l.b16 %v85
    %v335 = vunpack.c.h.b16 %v85
    %v336 = vunpack.c.l.b16 %v86
    %v337 = vunpack.c.h.b16 %v86
    %v338 = vunpack.c.l.b16 %v87
    %v339 = vunpack.c.h.b16 %v87
    %v340 = vunpack.c.l.b16 %v88
    %v341 = vunpack.c.h.b16 %v88
    %v342 = vunpack.c.l.b16 %v89
    %v343 = vunpack.c.h.b16 %v89
    %v344 = vunpack.c.l.b16 %v90
    %v345 = vunpack.c.h.b16 %v90
    %v346 = vunpack.c.l.b16 %v91
    %v347 = vunpack.c.h.b16 %v91
    %v348 = vunpack.c.l.b16 %v92
    %v349 = vunpack.c.h.b16 %v92
    %v350 = vunpack.c.l.b16 %v93
    %v351 = vunpack.c.h.b16 %v93
    %v352 = vunpack.c.l.b16 %v94
    %v353 = vunpack.c.h.b16 %v94
    %v354 = vunpack.c.l.b16 %v95
    %v355 = vunpack.c.h.b16 %v95
    %v356 = vunpack.c.l.b16 %v96
    %v357 = vunpack.c.h.b16 %v96
    %v358 = vunpack.c.l.b16 %v97
    %v359 = vunpack.c.h.b16 %v97
    %v360 = vunpack.c.l.b16 %v98
    %v361 = vunpack.c.h.b16 %v98
    %v362 = vunpack.c.l.b16 %v99
    %v363 = vunpack.c.h.b16 %v99
    %v364 = vunpack.c.l.b16 %v100
    %v365 = vunpack.c.h.b16 %v100
    %v366 = vunpack.c.l.b16 %v101
    %v367 = vunpack.c.h.b16 %v101
    %v368 = vunpack.c.l.b16 %v102
    %v369 = vunpack.c.h.b16 %v102
    %v370 = vunpack.c.l.b16 %v103
    %v371 = vunpack.c.h.b16 %v103
    %v372 = vunpack.c.l.b16 %v104
    %v373 = vunpack.c.h.b16 %v104
    %v374 = vunpack.c.l.b16 %v105
    %v375 = vunpack.c.h.b16 %v105
    %v376 = vunpack.c.l.b16 %v106
    %v377 = vunpack.c.h.b16 %v106
    %v378 = vunpack.c.l.b16 %v107
    %v379 = vunpack.c.h.b16 %v107
    %v380 = vunpack.c.l.b16 %v108
    %v381 = vunpack.c.h.b16 %v108
    %v382 = vunpack.c.l.b16 %v109
    %v383 = vunpack.c.h.b16 %v109
    %v384 = vunpack.c.l.b16 %v110
    %v385 = vunpack.c.h.b16 %v110
    %v386 = vunpack.c.l.b16 %v111
    %v387 = vunpack.c.h.b16 %v111
    %v388 = vunpack.c.l.b16 %v112
    %v389 = vunpack.c.h.b16 %v112
    %v390 = vunpack.c.l.b16 %v113
    %v391 = vunpack.c.h.b16 %v113
    %v392 = vunpack.c.l.b16 %v114
    %v393 = vunpack.c.h.b16 %v114
    %v394 = vunpack.c.l.b16 %v115
    %v395 = vunpack.c.h.b16 %v115
    %v396 = vunpack.c.l.b16 %v116
    %v397 = vunpack.c.h.b16 %v116
    %v398 = vunpack.c.l.b16 %v117
    %v399 = vunpack.c.h.b16 %v117
    %v400 = vunpack.c.l.b16 %v118
    %v401 = vunpack.c.h.b16 %v118
    %v402 = vunpack.c.l.b16 %v119
    %v403 = vunpack.c.h.b16 %v119
    %v404 = vunpack.c.l.b16 %v120
    %v405 = vunpack.c.h.b16 %v120
    %v406 = vunpack.c.l.b16 %v121
    %v407 = vunpack.c.h.b16 %v121
    %v408 = vunpack.c.l.b16 %v122
    %v409 = vunpack.c.h.b16 %v122
    %v410 = vunpack.c.l.b16 %v123
    %v411 = vunpack.c.h.b16 %v123
    %v412 = vunpack.c.l.b16 %v124
    %v413 = vunpack.c.h.b16 %v124
    %v414 = vunpack.c.l.b16 %v125
    %v415 = vunpack.c.h.b16 %v125
    %v416 = vunpack.c.l.b16 %v126
    %v417 = vunpack.c.h.b16 %v126
    %v418 = vunpack.c.l.b16 %v127
    %v419 = vunpack.c.h.b16 %v127
    %v420 = vunpack.c.l.b16 %v128
    %v421 = vunpack.c.h.b16 %v128
    %v422 = vunpack.c.l.b16 %v129
    %v423 = vunpack.c.h.b16 %v129
    %v424 = vunpack.c.l.b16 %v130
    %v425 = vunpack.c.h.b16 %v130
    %v426 = vunpack.c.l.b16 %v131
    %v427 = vunpack.c.h.b16 %v131
    %v428 = vunpack.c.l.b16 %v132
    %v429 = vunpack.c.h.b16 %v132
    %v430 = vunpack.c.l.b16 %v133
    %v431 = vunpack.c.h.b16 %v133
    %v432 = vunpack.c.l.b16 %v134
    %v433 = vunpack.c.h.b16 %v134
    %v434 = vunpack.c.l.b16 %v135
    %v435 = vunpack.c.h.b16 %v135
    %v436 = vunpack.c.l.b16 %v136
    %v437 = vunpack.c.h.b16 %v136
    %v438 = vunpack.c.l.b16 %v137
    %v439 = vunpack.c.h.b16 %v137
    %v440 = vunpack.c.l.b16 %v138
    %v441 = vunpack.c.h.b16 %v138
    %v442 = vunpack.c.l.b16 %v139
    %v443 = vunpack.c.h.b16 %v139
    %v444 = vunpack.c.l.b16 %v140
    %v445 = vunpack.c.h.b16 %v140
    %v446 = vunpack.c.l.b16 %v141
    %v447 = vunpack.c.h.b16 %v141
    %v448 = vunpack.c.l.b16 %v142
    %v449 = vunpack.c.h.b16 %v142
    %v450 = vunpack.c.l.b16 %v143
    %v451 = vunpack.c.h.b16 %v143
    %v452 = vunpack.c.l.b16 %v144
    %v453 = vunpack.c.h.b16 %v144
    %v454 = vunpack.c.l.b16 %v145
    %v455 = vunpack.c.h.b16 %v145
    %v456 = vunpack.c.l.b16 %v146
    %v457 = vunpack.c.h.b16 %v146
    %v458 = vunpack.c.l.b16 %v147
    %v459 = vunpack.c.h.b16 %v147
    %v460 = vpack.c.b16 %v270, %v268
    %v461 = vpack.c.b16 %v271, %v269
    %v462 = vpack.c.b16 %v274, %v272
    %v463 = vpack.c.b16 %v275, %v273
    %v464 = vpack.c.b16 %v278, %v276
    %v465 = vpack.c.b16 %v279, %v277
    %v466 = vpack.c.b16 %v282, %v280
    %v467 = vpack.c.b16 %v283, %v281
    %v468 = vpack.c.b16 %v286, %v284
    %v469 = vpack.c.b16 %v287, %v285
    %v470 = vpack.c.b16 %v290, %v288
    %v471 = vpack.c.b16 %v291, %v289
    %v472 = vpack.c.b16 %v294, %v292
    %v473 = vpack.c.b16 %v295, %v293
    %v474 = vpack.c.b16 %v298, %v296
    %v475 = vpack.c.b16 %v299, %v297
    %v476 = vpack.c.b16 %v302, %v300
    %v477 = vpack.c.b16 %v303, %v301
    %v478 = vpack.c.b16 %v306, %v304
    %v479 = vpack.c.b16 %v307, %v305
    %v480 = vpack.c.b16 %v310, %v308
    %v481 = vpack.c.b16 %v311, %v309
    %v482 = vpack.c.b16 %v314, %v312
    %v483 = vpack.c.b16 %v315, %v313
    %v484 = vpack.c.b16 %v318, %v316
    %v485 = vpack.c.b16 %v319, %v317
    %v486 = vpack.c.b16 %v322, %v320
    %v487 = vpack.c.b16 %v323, %v321
    %v488 = vpack.c.b16 %v326, %v324
    %v489 = vpack.c.b16 %v327, %v325
    %v490 = vpack.c.b16 %v330, %v328
    %v491 = vpack.c.b16 %v331, %v329
    %v492 = vpack.c.b16 %v334, %v332
    %v493 = vpack.c.b16 %v335, %v333
    %v494 = vpack.c.b16 %v338, %v336
    %v495 = vpack.c.b16 %v339, %v337
    %v496 = vpack.c.b16 %v342, %v340
    %v497 = vpack.c.b16 %v343, %v341
    %v498 = vpack.c.b16 %v346, %v344
    %v499 = vpack.c.b16 %v347, %v345
    %v500 = vpack.c.b16 %v350, %v348
    %v501 = vpack.c.b16 %v351, %v349
    %v502 = vpack.c.b16 %v354, %v352
    %v503 = vpack.c.b16 %v355, %v353
    %v504 = vpack.c.b16 %v358, %v356
    %v505 = vpack.c.b16 %v359, %v357
    %v506 = vpack.c.b16 %v362, %v360
    %v507 = vpack.c.b16 %v363, %v361
    %v508 = vpack.c.b16 %v366, %v364
    %v509 = vpack.c.b16 %v367, %v365
    %v510 = vpack.c.b16 %v370, %v368
    %v511 = vpack.c.b16 %v371, %v369
    %v512 = vpack.c.b16 %v374, %v372
    %v513 = vpack.c.b16 %v375, %v373
    %v514 = vpack.c.b16 %v378, %v376
    %v515 = vpack.c.b16 %v379, %v377
    %v516 = vpack.c.b16 %v382, %v380
    %v517 = vpack.c.b16 %v383, %v381
    %v518 = vpack.c.b16 %v386, %v384
    %v519 = vpack.c.b16 %v387, %v385
    %v520 = vpack.c.b16 %v390, %v388
    %v521 = vpack.c.b16 %v391, %v389
    %v522 = vpack.c.b16 %v394, %v392
    %v523 = vpack.c.b16 %v395, %v393
    %v524 = vpack.c.b16 %v398, %v396
    %v525 = vpack.c.b16 %v399, %v397
    %v526 = vpack.c.b16 %v402, %v400
    %v527 = vpack.c.b16 %v403, %v401
    %v528 = vpack.c.b16 %v406, %v404
    %v529 = vpack.c.b16 %v407, %v405
    %v530 = vpack.c.b16 %v410, %v408
    %v531 = vpack.c.b16 %v411, %v409
    %v532 = vpack.c.b16 %v414, %v412
    %v533 = vpack.c.b16 %v415, %v413
    %v534 = vpack.c.b16 %v418, %v416
    %v535 = vpack.c.b16 %v419, %v417
    %v536 = vpack.c.b16 %v422, %v420
    %v537 = vpack.c.b16 %v423, %v421
    %v538 = vpack.c.b16 %v426, %v424
    %v539 = vpack.c.b16 %v427, %v425
    %v540 = vpack.c.b16 %v430, %v428
    %v541 = vpack.c.b16 %v431, %v429
    %v542 = vpack.c.b16 %v434, %v432
    %v543 = vpack.c.b16 %v435, %v433
    %v544 = vpack.c.b16 %v438, %v436
    %v545 = vpack.c.b16 %v439, %v437
    %v546 = vpack.c.b16 %v442, %v440
    %v547 = vpack.c.b16 %v443, %v441
    %v548 = vpack.c.b16 %v446, %v444
    %v549 = vpack.c.b16 %v447, %v445
    %v550 = vpack.c.b16 %v450, %v448
    %v551 = vpack.c.b16 %v451, %v449
    %v552 = vpack.c.b16 %v454, %v452
    %v553 = vpack.c.b16 %v455, %v453
    %v554 = vpack.c.b16 %v458, %v456
    %v555 = vpack.c.b16 %v459, %v457
    %652 = vmatpush.bf16.xpose.msra.mxu0 %v474
    %653 = vmatpush.bf16.xpose.msra.mxu0 %v472
    %654 = vmatpush.bf16.xpose.msra.mxu0 %v470
    %655 = vmatpush.bf16.xpose.msra.mxu0 %v468
    %656 = vmatpush.bf16.xpose.msra.mxu0 %v466
    %657 = vmatpush.bf16.xpose.msra.mxu0 %v464
    %658 = vmatpush.bf16.xpose.msra.mxu0 %v462
    %659 = vmatpush.bf16.xpose.msra.mxu0 %v460
    %660 = vmatmul.bf16.gmra.mxu0 %v168
    %v661 = vpop.f32.mrf.mxu0
    %v662 = vadd.f32 %v150, %v661
    %v663 = vpop.f32.mrf.mxu0
    %v664 = vadd.f32 %v150, %v663
    %665 = vdwg.mxu0
    %666 = vmatpush.bf16.xpose.msra.mxu0 %v475
    %667 = vmatpush.bf16.xpose.msra.mxu0 %v473
    %668 = vmatpush.bf16.xpose.msra.mxu0 %v471
    %669 = vmatpush.bf16.xpose.msra.mxu0 %v469
    %670 = vmatpush.bf16.xpose.msra.mxu0 %v467
    %671 = vmatpush.bf16.xpose.msra.mxu0 %v465
    %672 = vmatpush.bf16.xpose.msra.mxu0 %v463
    %673 = vmatpush.bf16.xpose.msra.mxu0 %v461
    %674 = vmatmul.bf16.gmra.mxu0 %v169
    %v675 = vpop.f32.mrf.mxu0
    %v676 = vadd.f32 %v662, %v675
    %v677 = vpop.f32.mrf.mxu0
    %v678 = vadd.f32 %v664, %v677
    %679 = vdwg.mxu0
    %680 = vmatpush.bf16.xpose.msra.mxu0 %v490
    %681 = vmatpush.bf16.xpose.msra.mxu0 %v488
    %682 = vmatpush.bf16.xpose.msra.mxu0 %v486
    %683 = vmatpush.bf16.xpose.msra.mxu0 %v484
    %684 = vmatpush.bf16.xpose.msra.mxu0 %v482
    %685 = vmatpush.bf16.xpose.msra.mxu0 %v480
    %686 = vmatpush.bf16.xpose.msra.mxu0 %v478
    %687 = vmatpush.bf16.xpose.msra.mxu0 %v476
    %688 = vmatmul.bf16.gmra.mxu0 %v168
    %v689 = vpop.f32.mrf.mxu0
    %v690 = vadd.f32 %v151, %v689
    %v691 = vpop.f32.mrf.mxu0
    %v692 = vadd.f32 %v151, %v691
    %693 = vdwg.mxu0
    %694 = vmatpush.bf16.xpose.msra.mxu0 %v491
    %695 = vmatpush.bf16.xpose.msra.mxu0 %v489
    %696 = vmatpush.bf16.xpose.msra.mxu0 %v487
    %697 = vmatpush.bf16.xpose.msra.mxu0 %v485
    %698 = vmatpush.bf16.xpose.msra.mxu0 %v483
    %699 = vmatpush.bf16.xpose.msra.mxu0 %v481
    %700 = vmatpush.bf16.xpose.msra.mxu0 %v479
    %701 = vmatpush.bf16.xpose.msra.mxu0 %v477
    %702 = vmatmul.bf16.gmra.mxu0 %v169
    %v703 = vpop.f32.mrf.mxu0
    %v704 = vadd.f32 %v690, %v703
    %v705 = vpop.f32.mrf.mxu0
    %v706 = vadd.f32 %v692, %v705
    %707 = vdwg.mxu0
    %708 = vmatpush.bf16.xpose.msra.mxu0 %v506
    %709 = vmatpush.bf16.xpose.msra.mxu0 %v504
    %710 = vmatpush.bf16.xpose.msra.mxu0 %v502
    %711 = vmatpush.bf16.xpose.msra.mxu0 %v500
    %712 = vmatpush.bf16.xpose.msra.mxu0 %v498
    %713 = vmatpush.bf16.xpose.msra.mxu0 %v496
    %714 = vmatpush.bf16.xpose.msra.mxu0 %v494
    %715 = vmatpush.bf16.xpose.msra.mxu0 %v492
    %716 = vmatmul.bf16.gmra.mxu0 %v168
    %v717 = vpop.f32.mrf.mxu0
    %v718 = vadd.f32 %v152, %v717
    %v719 = vpop.f32.mrf.mxu0
    %v720 = vadd.f32 %v152, %v719
    %721 = vdwg.mxu0
    %722 = vmatpush.bf16.xpose.msra.mxu0 %v507
    %723 = vmatpush.bf16.xpose.msra.mxu0 %v505
    %724 = vmatpush.bf16.xpose.msra.mxu0 %v503
    %725 = vmatpush.bf16.xpose.msra.mxu0 %v501
    %726 = vmatpush.bf16.xpose.msra.mxu0 %v499
    %727 = vmatpush.bf16.xpose.msra.mxu0 %v497
    %728 = vmatpush.bf16.xpose.msra.mxu0 %v495
    %729 = vmatpush.bf16.xpose.msra.mxu0 %v493
    %730 = vmatmul.bf16.gmra.mxu0 %v169
    %v731 = vpop.f32.mrf.mxu0
    %v732 = vadd.f32 %v718, %v731
    %v733 = vpop.f32.mrf.mxu0
    %v734 = vadd.f32 %v720, %v733
    %735 = vdwg.mxu0
    %736 = vmatpush.bf16.xpose.msra.mxu0 %v522
    %737 = vmatpush.bf16.xpose.msra.mxu0 %v520
    %738 = vmatpush.bf16.xpose.msra.mxu0 %v518
    %739 = vmatpush.bf16.xpose.msra.mxu0 %v516
    %740 = vmatpush.bf16.xpose.msra.mxu0 %v514
    %741 = vmatpush.bf16.xpose.msra.mxu0 %v512
    %742 = vmatpush.bf16.xpose.msra.mxu0 %v510
    %743 = vmatpush.bf16.xpose.msra.mxu0 %v508
    %744 = vmatmul.bf16.gmra.mxu0 %v168
    %v745 = vpop.f32.mrf.mxu0
    %v746 = vadd.f32 %v153, %v745
    %v747 = vpop.f32.mrf.mxu0
    %v748 = vadd.f32 %v153, %v747
    %749 = vdwg.mxu0
    %750 = vmatpush.bf16.xpose.msra.mxu0 %v523
    %751 = vmatpush.bf16.xpose.msra.mxu0 %v521
    %752 = vmatpush.bf16.xpose.msra.mxu0 %v519
    %753 = vmatpush.bf16.xpose.msra.mxu0 %v517
    %754 = vmatpush.bf16.xpose.msra.mxu0 %v515
    %755 = vmatpush.bf16.xpose.msra.mxu0 %v513
    %756 = vmatpush.bf16.xpose.msra.mxu0 %v511
    %757 = vmatpush.bf16.xpose.msra.mxu0 %v509
    %758 = vmatmul.bf16.gmra.mxu0 %v169
    %v759 = vpop.f32.mrf.mxu0
    %v760 = vadd.f32 %v746, %v759
    %v761 = vpop.f32.mrf.mxu0
    %v762 = vadd.f32 %v748, %v761
    %763 = vdwg.mxu0
    %764 = vmatpush.bf16.xpose.msra.mxu0 %v538
    %765 = vmatpush.bf16.xpose.msra.mxu0 %v536
    %766 = vmatpush.bf16.xpose.msra.mxu0 %v534
    %767 = vmatpush.bf16.xpose.msra.mxu0 %v532
    %768 = vmatpush.bf16.xpose.msra.mxu0 %v530
    %769 = vmatpush.bf16.xpose.msra.mxu0 %v528
    %770 = vmatpush.bf16.xpose.msra.mxu0 %v526
    %771 = vmatpush.bf16.xpose.msra.mxu0 %v524
    %772 = vmatmul.bf16.gmra.mxu0 %v168
    %v773 = vpop.f32.mrf.mxu0
    %v774 = vadd.f32 %v154, %v773
    %v775 = vpop.f32.mrf.mxu0
    %v776 = vadd.f32 %v154, %v775
    %777 = vdwg.mxu0
    %778 = vmatpush.bf16.xpose.msra.mxu0 %v539
    %779 = vmatpush.bf16.xpose.msra.mxu0 %v537
    %780 = vmatpush.bf16.xpose.msra.mxu0 %v535
    %781 = vmatpush.bf16.xpose.msra.mxu0 %v533
    %782 = vmatpush.bf16.xpose.msra.mxu0 %v531
    %783 = vmatpush.bf16.xpose.msra.mxu0 %v529
    %784 = vmatpush.bf16.xpose.msra.mxu0 %v527
    %785 = vmatpush.bf16.xpose.msra.mxu0 %v525
    %786 = vmatmul.bf16.gmra.mxu0 %v169
    %v787 = vpop.f32.mrf.mxu0
    %v788 = vadd.f32 %v774, %v787
    %v789 = vpop.f32.mrf.mxu0
    %v790 = vadd.f32 %v776, %v789
    %791 = vdwg.mxu0
    %792 = vmatpush.bf16.xpose.msra.mxu0 %v554
    %793 = vmatpush.bf16.xpose.msra.mxu0 %v552
    %794 = vmatpush.bf16.xpose.msra.mxu0 %v550
    %795 = vmatpush.bf16.xpose.msra.mxu0 %v548
    %796 = vmatpush.bf16.xpose.msra.mxu0 %v546
    %797 = vmatpush.bf16.xpose.msra.mxu0 %v544
    %798 = vmatpush.bf16.xpose.msra.mxu0 %v542
    %799 = vmatpush.bf16.xpose.msra.mxu0 %v540
    %800 = vmatmul.bf16.gmra.mxu0 %v168
    %v801 = vpop.f32.mrf.mxu0
    %v802 = vadd.f32 %v155, %v801
    %v803 = vpop.f32.mrf.mxu0
    %v804 = vadd.f32 %v155, %v803
    %805 = vdwg.mxu0
    %806 = vmatpush.bf16.xpose.msra.mxu0 %v555
    %807 = vmatpush.bf16.xpose.msra.mxu0 %v553
    %808 = vmatpush.bf16.xpose.msra.mxu0 %v551
    %809 = vmatpush.bf16.xpose.msra.mxu0 %v549
    %810 = vmatpush.bf16.xpose.msra.mxu0 %v547
    %811 = vmatpush.bf16.xpose.msra.mxu0 %v545
    %812 = vmatpush.bf16.xpose.msra.mxu0 %v543
    %813 = vmatpush.bf16.xpose.msra.mxu0 %v541
    %814 = vmatmul.bf16.gmra.mxu0 %v169
    %v815 = vpop.f32.mrf.mxu0
    %v816 = vadd.f32 %v802, %v815
    %v817 = vpop.f32.mrf.mxu0
    %v818 = vadd.f32 %v804, %v817
    %819 = vdwg.mxu0
    %v820 = vmin.f32 %v676, %v678
    %821 = vmin.xlane.f32.xlu0 %v820
    %v822 = vpop.xlane.xlu0 %821
    %v823 = vrot.slane %v822, 4
    %v824 = vmin.f32 %v822, %v823
    %v825 = vrot.slane %v824, 2
    %v826 = vmin.f32 %v824, %v825
    %v827 = vrot.slane %v826, 1
    %v828 = vmin.f32 %v826, %v827
    %s829 = vtos %v828
    %v830 = vmax.f32 %v676, %v678
    %831 = vmax.xlane.f32.xlu0 %v830
    %v832 = vpop.xlane.xlu0 %831
    %v833 = vrot.slane %v832, 4
    %v834 = vmax.f32 %v832, %v833
    %v835 = vrot.slane %v834, 2
    %v836 = vmax.f32 %v834, %v835
    %v837 = vrot.slane %v836, 1
    %v838 = vmax.f32 %v836, %v837
    %s839 = vtos %v838
    %v840 = vmin.f32 %v760, %v762
    %841 = vmin.xlane.f32.xlu0 %v840
    %v842 = vpop.xlane.xlu0 %841
    %v843 = vrot.slane %v842, 4
    %v844 = vmin.f32 %v842, %v843
    %v845 = vrot.slane %v844, 2
    %v846 = vmin.f32 %v844, %v845
    %v847 = vrot.slane %v846, 1
    %v848 = vmin.f32 %v846, %v847
    %s849 = vtos %v848
    %s850 = smin.f32 %s829, %s849
    %v851 = vmax.f32 %v760, %v762
    %852 = vmax.xlane.f32.xlu0 %v851
    %v853 = vpop.xlane.xlu0 %852
    %v854 = vrot.slane %v853, 4
    %v855 = vmax.f32 %v853, %v854
    %v856 = vrot.slane %v855, 2
    %v857 = vmax.f32 %v855, %v856
    %v858 = vrot.slane %v857, 1
    %v859 = vmax.f32 %v857, %v858
    %s860 = vtos %v859
    %s861 = smax.f32 %s839, %s860
    %s862 = ssub.f32 %s861, %s850
    %v863 = vrcp.pop 16.0
    %v864 = vmul.f32 16.0, %v863
    %v865 = vsub.f32 1.0, %v864
    %v866 = vmul.f32 %v863, %v865
    %v867 = vadd.f32 %v863, %v866
    %vm868 = vweird.f32 %v863
    %v869 = vsel %vm868, %v863, %v867
    %s870 = vtos %v869
    %s871 = smul.f32 %s862, %s870
    %v872 = vstv %s850
    %v873 = vsub.f32 %v676, %v872
    %v874 = vsub.f32 %v678, %v872
    %s875 = smul.f32 %s871, 0.5
    %v876 = vstv %s875
    %v877 = vadd.f32 %v873, %v876
    %v878 = vadd.f32 %v874, %v876
    %v879 = vstv %s871
    %v880 = vrcp.pop %v879
    %v881 = vmul.f32 %v879, %v880
    %v882 = vsub.f32 1.0, %v881
    %v883 = vmul.f32 %v880, %v882
    %v884 = vadd.f32 %v880, %v883
    %vm885 = vweird.f32 %v879
    %vm886 = vweird.f32 %v880
    %vm887 = vmor %vm885, %vm886
    %v888 = vsel %vm887, %v880, %v884
    %v889 = vand.u32 2147483647, %v879
    %vm890 = vcmp.eq.f32.partialorder %v889, 8.507059e+37
    %v891 = vand.u32 %v879, 2147483648
    %v892 = vor.u32 1.1754944e-38, %v891
    %v893 = vsel %vm890, %v892, %v888
    %v894 = vmul.f32 %v877, %v893
    %v895 = vmul.f32 %v878, %v893
    %v896 = vfloor.f32 %v894
    %v897 = vfloor.f32 %v895
    %898 = vrot.lane.b32.xlu0 %v896, 64
    %v899 = vpop.permute.xlu0 %898
    %900 = vrot.lane.b32.xlu0 %v897, 64
    %v901 = vpop.permute.xlu0 %900
    %v902 = vlaneseq
    %v903 = vand.u32 %v902, 127
    %vm904 = vcmp.lt.s32.totalorder %v903, 64
    %v905 = vsel %vm904, %v896, %v899
    %v906 = vsel %vm904, %v897, %v901
    %v907 = vsel %vm904, %v899, %v896
    %v908 = vsel %vm904, %v901, %v897
    %v909 = vmul.f32 %v905, 16.0
    %v910 = vmul.f32 %v906, 16.0
    %v911 = vadd.f32 %v909, %v907
    %v912 = vadd.f32 %v910, %v908
    %vm913 = vcmp.ge.f32.partialorder %v911, 256.0
    %vm914 = vcmp.ge.f32.partialorder %v912, 256.0
    %v915 = vsub.f32 %v911, 256.0
    %v916 = vsub.f32 %v912, 256.0
    %v917 = vsel %vm913, %v915, %v911
    %v918 = vsel %vm914, %v916, %v912
    %v919 = vrcp.pop 16.0
    %v920 = vmul.f32 16.0, %v919
    %v921 = vsub.f32 1.0, %v920
    %v922 = vmul.f32 %v919, %v921
    %v923 = vadd.f32 %v919, %v922
    %vm924 = vweird.f32 %v919
    %v925 = vsel %vm924, %v919, %v923
    %v926 = vmul.f32 %v917, %v925
    %v927 = vmul.f32 %v918, %v925
    %v928 = vfloor.f32 %v926
    %v929 = vfloor.f32 %v927
    %v930 = vmul.f32 %v928, 16.0
    %v931 = vmul.f32 %v929, 16.0
    %v932 = vsub.f32 %v917, %v930
    %v933 = vsub.f32 %v918, %v931
    %v934 = vsel %vm904, %v928, %v932
    %v935 = vsel %vm904, %v929, %v933
    %v936 = vmul.f32 %v934, %v879
    %v937 = vmul.f32 %v935, %v879
    %v938 = vadd.f32 %v936, %v872
    %v939 = vadd.f32 %v937, %v872
    %v940 = vsub.f32 %v760, %v872
    %v941 = vsub.f32 %v762, %v872
    %v942 = vadd.f32 %v940, %v876
    %v943 = vadd.f32 %v941, %v876
    %v944 = vmul.f32 %v942, %v893
    %v945 = vmul.f32 %v943, %v893
    %v946 = vfloor.f32 %v944
    %v947 = vfloor.f32 %v945
    %948 = vrot.lane.b32.xlu0 %v946, 64
    %v949 = vpop.permute.xlu0 %948
    %950 = vrot.lane.b32.xlu0 %v947, 64
    %v951 = vpop.permute.xlu0 %950
    %v952 = vsel %vm904, %v946, %v949
    %v953 = vsel %vm904, %v947, %v951
    %v954 = vsel %vm904, %v949, %v946
    %v955 = vsel %vm904, %v951, %v947
    %v956 = vmul.f32 %v952, 16.0
    %v957 = vmul.f32 %v953, 16.0
    %v958 = vadd.f32 %v956, %v954
    %v959 = vadd.f32 %v957, %v955
    %vm960 = vcmp.ge.f32.partialorder %v958, 256.0
    %vm961 = vcmp.ge.f32.partialorder %v959, 256.0
    %v962 = vsub.f32 %v958, 256.0
    %v963 = vsub.f32 %v959, 256.0
    %v964 = vsel %vm960, %v962, %v958
    %v965 = vsel %vm961, %v963, %v959
    %v966 = vmul.f32 %v964, %v925
    %v967 = vmul.f32 %v965, %v925
    %v968 = vfloor.f32 %v966
    %v969 = vfloor.f32 %v967
    %v970 = vmul.f32 %v968, 16.0
    %v971 = vmul.f32 %v969, 16.0
    %v972 = vsub.f32 %v964, %v970
    %v973 = vsub.f32 %v965, %v971
    %v974 = vsel %vm904, %v968, %v972
    %v975 = vsel %vm904, %v969, %v973
    %v976 = vmul.f32 %v974, %v879
    %v977 = vmul.f32 %v975, %v879
    %v978 = vadd.f32 %v976, %v872
    %v979 = vadd.f32 %v977, %v872
    %v980 = vmin.f32 %v704, %v706
    %981 = vmin.xlane.f32.xlu0 %v980
    %v982 = vpop.xlane.xlu0 %981
    %v983 = vrot.slane %v982, 4
    %v984 = vmin.f32 %v982, %v983
    %v985 = vrot.slane %v984, 2
    %v986 = vmin.f32 %v984, %v985
    %v987 = vrot.slane %v986, 1
    %v988 = vmin.f32 %v986, %v987
    %s989 = vtos %v988
    %v990 = vmax.f32 %v704, %v706
    %991 = vmax.xlane.f32.xlu0 %v990
    %v992 = vpop.xlane.xlu0 %991
    %v993 = vrot.slane %v992, 4
    %v994 = vmax.f32 %v992, %v993
    %v995 = vrot.slane %v994, 2
    %v996 = vmax.f32 %v994, %v995
    %v997 = vrot.slane %v996, 1
    %v998 = vmax.f32 %v996, %v997
    %s999 = vtos %v998
    %v1000 = vmin.f32 %v788, %v790
    %1001 = vmin.xlane.f32.xlu0 %v1000
    %v1002 = vpop.xlane.xlu0 %1001
    %v1003 = vrot.slane %v1002, 4
    %v1004 = vmin.f32 %v1002, %v1003
    %v1005 = vrot.slane %v1004, 2
    %v1006 = vmin.f32 %v1004, %v1005
    %v1007 = vrot.slane %v1006, 1
    %v1008 = vmin.f32 %v1006, %v1007
    %s1009 = vtos %v1008
    %s1010 = smin.f32 %s989, %s1009
    %v1011 = vmax.f32 %v788, %v790
    %1012 = vmax.xlane.f32.xlu0 %v1011
    %v1013 = vpop.xlane.xlu0 %1012
    %v1014 = vrot.slane %v1013, 4
    %v1015 = vmax.f32 %v1013, %v1014
    %v1016 = vrot.slane %v1015, 2
    %v1017 = vmax.f32 %v1015, %v1016
    %v1018 = vrot.slane %v1017, 1
    %v1019 = vmax.f32 %v1017, %v1018
    %s1020 = vtos %v1019
    %s1021 = smax.f32 %s999, %s1020
    %s1022 = ssub.f32 %s1021, %s1010
    %v1023 = vrcp.pop 16.0
    %v1024 = vmul.f32 16.0, %v1023
    %v1025 = vsub.f32 1.0, %v1024
    %v1026 = vmul.f32 %v1023, %v1025
    %v1027 = vadd.f32 %v1023, %v1026
    %vm1028 = vweird.f32 %v1023
    %v1029 = vsel %vm1028, %v1023, %v1027
    %s1030 = vtos %v1029
    %s1031 = smul.f32 %s1022, %s1030
    %v1032 = vstv %s1010
    %v1033 = vsub.f32 %v704, %v1032
    %v1034 = vsub.f32 %v706, %v1032
    %s1035 = smul.f32 %s1031, 0.5
    %v1036 = vstv %s1035
    %v1037 = vadd.f32 %v1033, %v1036
    %v1038 = vadd.f32 %v1034, %v1036
    %v1039 = vstv %s1031
    %v1040 = vrcp.pop %v1039
    %v1041 = vmul.f32 %v1039, %v1040
    %v1042 = vsub.f32 1.0, %v1041
    %v1043 = vmul.f32 %v1040, %v1042
    %v1044 = vadd.f32 %v1040, %v1043
    %vm1045 = vweird.f32 %v1039
    %vm1046 = vweird.f32 %v1040
    %vm1047 = vmor %vm1045, %vm1046
    %v1048 = vsel %vm1047, %v1040, %v1044
    %v1049 = vand.u32 2147483647, %v1039
    %vm1050 = vcmp.eq.f32.partialorder %v1049, 8.507059e+37
    %v1051 = vand.u32 %v1039, 2147483648
    %v1052 = vor.u32 1.1754944e-38, %v1051
    %v1053 = vsel %vm1050, %v1052, %v1048
    %v1054 = vmul.f32 %v1037, %v1053
    %v1055 = vmul.f32 %v1038, %v1053
    %v1056 = vfloor.f32 %v1054
    %v1057 = vfloor.f32 %v1055
    %1058 = vrot.lane.b32.xlu0 %v1056, 64
    %v1059 = vpop.permute.xlu0 %1058
    %1060 = vrot.lane.b32.xlu0 %v1057, 64
    %v1061 = vpop.permute.xlu0 %1060
    %v1062 = vsel %vm904, %v1056, %v1059
    %v1063 = vsel %vm904, %v1057, %v1061
    %v1064 = vsel %vm904, %v1059, %v1056
    %v1065 = vsel %vm904, %v1061, %v1057
    %v1066 = vmul.f32 %v1062, 16.0
    %v1067 = vmul.f32 %v1063, 16.0
    %v1068 = vadd.f32 %v1066, %v1064
    %v1069 = vadd.f32 %v1067, %v1065
    %vm1070 = vcmp.ge.f32.partialorder %v1068, 256.0
    %vm1071 = vcmp.ge.f32.partialorder %v1069, 256.0
    %v1072 = vsub.f32 %v1068, 256.0
    %v1073 = vsub.f32 %v1069, 256.0
    %v1074 = vsel %vm1070, %v1072, %v1068
    %v1075 = vsel %vm1071, %v1073, %v1069
    %v1076 = vmul.f32 %v1074, %v925
    %v1077 = vmul.f32 %v1075, %v925
    %v1078 = vfloor.f32 %v1076
    %v1079 = vfloor.f32 %v1077
    %v1080 = vmul.f32 %v1078, 16.0
    %v1081 = vmul.f32 %v1079, 16.0
    %v1082 = vsub.f32 %v1074, %v1080
    %v1083 = vsub.f32 %v1075, %v1081
    %v1084 = vsel %vm904, %v1078, %v1082
    %v1085 = vsel %vm904, %v1079, %v1083
    %v1086 = vmul.f32 %v1084, %v1039
    %v1087 = vmul.f32 %v1085, %v1039
    %v1088 = vadd.f32 %v1086, %v1032
    %v1089 = vadd.f32 %v1087, %v1032
    %v1090 = vsub.f32 %v788, %v1032
    %v1091 = vsub.f32 %v790, %v1032
    %v1092 = vadd.f32 %v1090, %v1036
    %v1093 = vadd.f32 %v1091, %v1036
    %v1094 = vmul.f32 %v1092, %v1053
    %v1095 = vmul.f32 %v1093, %v1053
    %v1096 = vfloor.f32 %v1094
    %v1097 = vfloor.f32 %v1095
    %1098 = vrot.lane.b32.xlu0 %v1096, 64
    %v1099 = vpop.permute.xlu0 %1098
    %1100 = vrot.lane.b32.xlu0 %v1097, 64
    %v1101 = vpop.permute.xlu0 %1100
    %v1102 = vsel %vm904, %v1096, %v1099
    %v1103 = vsel %vm904, %v1097, %v1101
    %v1104 = vsel %vm904, %v1099, %v1096
    %v1105 = vsel %vm904, %v1101, %v1097
    %v1106 = vmul.f32 %v1102, 16.0
    %v1107 = vmul.f32 %v1103, 16.0
    %v1108 = vadd.f32 %v1106, %v1104
    %v1109 = vadd.f32 %v1107, %v1105
    %vm1110 = vcmp.ge.f32.partialorder %v1108, 256.0
    %vm1111 = vcmp.ge.f32.partialorder %v1109, 256.0
    %v1112 = vsub.f32 %v1108, 256.0
    %v1113 = vsub.f32 %v1109, 256.0
    %v1114 = vsel %vm1110, %v1112, %v1108
    %v1115 = vsel %vm1111, %v1113, %v1109
    %v1116 = vmul.f32 %v1114, %v925
    %v1117 = vmul.f32 %v1115, %v925
    %v1118 = vfloor.f32 %v1116
    %v1119 = vfloor.f32 %v1117
    %v1120 = vmul.f32 %v1118, 16.0
    %v1121 = vmul.f32 %v1119, 16.0
    %v1122 = vsub.f32 %v1114, %v1120
    %v1123 = vsub.f32 %v1115, %v1121
    %v1124 = vsel %vm904, %v1118, %v1122
    %v1125 = vsel %vm904, %v1119, %v1123
    %v1126 = vmul.f32 %v1124, %v1039
    %v1127 = vmul.f32 %v1125, %v1039
    %v1128 = vadd.f32 %v1126, %v1032
    %v1129 = vadd.f32 %v1127, %v1032
    %v1130 = vmin.f32 %v732, %v734
    %1131 = vmin.xlane.f32.xlu0 %v1130
    %v1132 = vpop.xlane.xlu0 %1131
    %v1133 = vrot.slane %v1132, 4
    %v1134 = vmin.f32 %v1132, %v1133
    %v1135 = vrot.slane %v1134, 2
    %v1136 = vmin.f32 %v1134, %v1135
    %v1137 = vrot.slane %v1136, 1
    %v1138 = vmin.f32 %v1136, %v1137
    %s1139 = vtos %v1138
    %v1140 = vmax.f32 %v732, %v734
    %1141 = vmax.xlane.f32.xlu0 %v1140
    %v1142 = vpop.xlane.xlu0 %1141
    %v1143 = vrot.slane %v1142, 4
    %v1144 = vmax.f32 %v1142, %v1143
    %v1145 = vrot.slane %v1144, 2
    %v1146 = vmax.f32 %v1144, %v1145
    %v1147 = vrot.slane %v1146, 1
    %v1148 = vmax.f32 %v1146, %v1147
    %s1149 = vtos %v1148
    %v1150 = vmin.f32 %v816, %v818
    %1151 = vmin.xlane.f32.xlu0 %v1150
    %v1152 = vpop.xlane.xlu0 %1151
    %v1153 = vrot.slane %v1152, 4
    %v1154 = vmin.f32 %v1152, %v1153
    %v1155 = vrot.slane %v1154, 2
    %v1156 = vmin.f32 %v1154, %v1155
    %v1157 = vrot.slane %v1156, 1
    %v1158 = vmin.f32 %v1156, %v1157
    %s1159 = vtos %v1158
    %s1160 = smin.f32 %s1139, %s1159
    %v1161 = vmax.f32 %v816, %v818
    %1162 = vmax.xlane.f32.xlu0 %v1161
    %v1163 = vpop.xlane.xlu0 %1162
    %v1164 = vrot.slane %v1163, 4
    %v1165 = vmax.f32 %v1163, %v1164
    %v1166 = vrot.slane %v1165, 2
    %v1167 = vmax.f32 %v1165, %v1166
    %v1168 = vrot.slane %v1167, 1
    %v1169 = vmax.f32 %v1167, %v1168
    %s1170 = vtos %v1169
    %s1171 = smax.f32 %s1149, %s1170
    %s1172 = ssub.f32 %s1171, %s1160
    %v1173 = vrcp.pop 16.0
    %v1174 = vmul.f32 16.0, %v1173
    %v1175 = vsub.f32 1.0, %v1174
    %v1176 = vmul.f32 %v1173, %v1175
    %v1177 = vadd.f32 %v1173, %v1176
    %vm1178 = vweird.f32 %v1173
    %v1179 = vsel %vm1178, %v1173, %v1177
    %s1180 = vtos %v1179
    %s1181 = smul.f32 %s1172, %s1180
    %v1182 = vstv %s1160
    %v1183 = vsub.f32 %v732, %v1182
    %v1184 = vsub.f32 %v734, %v1182
    %s1185 = smul.f32 %s1181, 0.5
    %v1186 = vstv %s1185
    %v1187 = vadd.f32 %v1183, %v1186
    %v1188 = vadd.f32 %v1184, %v1186
    %v1189 = vstv %s1181
    %v1190 = vrcp.pop %v1189
    %v1191 = vmul.f32 %v1189, %v1190
    %v1192 = vsub.f32 1.0, %v1191
    %v1193 = vmul.f32 %v1190, %v1192
    %v1194 = vadd.f32 %v1190, %v1193
    %vm1195 = vweird.f32 %v1189
    %vm1196 = vweird.f32 %v1190
    %vm1197 = vmor %vm1195, %vm1196
    %v1198 = vsel %vm1197, %v1190, %v1194
    %v1199 = vand.u32 2147483647, %v1189
    %vm1200 = vcmp.eq.f32.partialorder %v1199, 8.507059e+37
    %v1201 = vand.u32 %v1189, 2147483648
    %v1202 = vor.u32 1.1754944e-38, %v1201
    %v1203 = vsel %vm1200, %v1202, %v1198
    %v1204 = vmul.f32 %v1187, %v1203
    %v1205 = vmul.f32 %v1188, %v1203
    %v1206 = vfloor.f32 %v1204
    %v1207 = vfloor.f32 %v1205
    %1208 = vrot.lane.b32.xlu0 %v1206, 64
    %v1209 = vpop.permute.xlu0 %1208
    %1210 = vrot.lane.b32.xlu0 %v1207, 64
    %v1211 = vpop.permute.xlu0 %1210
    %v1212 = vsel %vm904, %v1206, %v1209
    %v1213 = vsel %vm904, %v1207, %v1211
    %v1214 = vsel %vm904, %v1209, %v1206
    %v1215 = vsel %vm904, %v1211, %v1207
    %v1216 = vmul.f32 %v1212, 16.0
    %v1217 = vmul.f32 %v1213, 16.0
    %v1218 = vadd.f32 %v1216, %v1214
    %v1219 = vadd.f32 %v1217, %v1215
    %vm1220 = vcmp.ge.f32.partialorder %v1218, 256.0
    %vm1221 = vcmp.ge.f32.partialorder %v1219, 256.0
    %v1222 = vsub.f32 %v1218, 256.0
    %v1223 = vsub.f32 %v1219, 256.0
    %v1224 = vsel %vm1220, %v1222, %v1218
    %v1225 = vsel %vm1221, %v1223, %v1219
    %v1226 = vmul.f32 %v1224, %v925
    %v1227 = vmul.f32 %v1225, %v925
    %v1228 = vfloor.f32 %v1226
    %v1229 = vfloor.f32 %v1227
    %v1230 = vmul.f32 %v1228, 16.0
    %v1231 = vmul.f32 %v1229, 16.0
    %v1232 = vsub.f32 %v1224, %v1230
    %v1233 = vsub.f32 %v1225, %v1231
    %v1234 = vsel %vm904, %v1228, %v1232
    %v1235 = vsel %vm904, %v1229, %v1233
    %v1236 = vmul.f32 %v1234, %v1189
    %v1237 = vmul.f32 %v1235, %v1189
    %v1238 = vadd.f32 %v1236, %v1182
    %v1239 = vadd.f32 %v1237, %v1182
    %v1240 = vsub.f32 %v816, %v1182
    %v1241 = vsub.f32 %v818, %v1182
    %v1242 = vadd.f32 %v1240, %v1186
    %v1243 = vadd.f32 %v1241, %v1186
    %v1244 = vmul.f32 %v1242, %v1203
    %v1245 = vmul.f32 %v1243, %v1203
    %v1246 = vfloor.f32 %v1244
    %v1247 = vfloor.f32 %v1245
    %1248 = vrot.lane.b32.xlu0 %v1246, 64
    %v1249 = vpop.permute.xlu0 %1248
    %1250 = vrot.lane.b32.xlu0 %v1247, 64
    %v1251 = vpop.permute.xlu0 %1250
    %v1252 = vsel %vm904, %v1246, %v1249
    %v1253 = vsel %vm904, %v1247, %v1251
    %v1254 = vsel %vm904, %v1249, %v1246
    %v1255 = vsel %vm904, %v1251, %v1247
    %v1256 = vmul.f32 %v1252, 16.0
    %v1257 = vmul.f32 %v1253, 16.0
    %v1258 = vadd.f32 %v1256, %v1254
    %v1259 = vadd.f32 %v1257, %v1255
    %vm1260 = vcmp.ge.f32.partialorder %v1258, 256.0
    %vm1261 = vcmp.ge.f32.partialorder %v1259, 256.0
    %v1262 = vsub.f32 %v1258, 256.0
    %v1263 = vsub.f32 %v1259, 256.0
    %v1264 = vsel %vm1260, %v1262, %v1258
    %v1265 = vsel %vm1261, %v1263, %v1259
    %v1266 = vmul.f32 %v1264, %v925
    %v1267 = vmul.f32 %v1265, %v925
    %v1268 = vfloor.f32 %v1266
    %v1269 = vfloor.f32 %v1267
    %v1270 = vmul.f32 %v1268, 16.0
    %v1271 = vmul.f32 %v1269, 16.0
    %v1272 = vsub.f32 %v1264, %v1270
    %v1273 = vsub.f32 %v1265, %v1271
    %v1274 = vsel %vm904, %v1268, %v1272
    %v1275 = vsel %vm904, %v1269, %v1273
    %v1276 = vmul.f32 %v1274, %v1189
    %v1277 = vmul.f32 %v1275, %v1189
    %v1278 = vadd.f32 %v1276, %v1182
    %v1279 = vadd.f32 %v1277, %v1182
    %v1280 = vlaneseq
    %v1281 = vshrl.u32 %v1280, 7
    %vm1282 = vcmp.le.s32.totalorder %v903, %v1281
    %v1283 = vpack.c.bf16 %v938, %v938
    %v1284 = vpack.c.bf16 %v1088, %v1088
    %v1285 = vpack.c.bf16 %v1238, %v1238
    %1286 = vmatpush.bf16.xpose.msra.mxu0 0
    %1287 = vmatpush.bf16.xpose.msra.mxu0 0
    %1288 = vmatpush.bf16.xpose.msra.mxu0 0
    %1289 = vmatpush.bf16.xpose.msra.mxu0 0
    %1290 = vmatpush.bf16.xpose.msra.mxu0 0
    %1291 = vmatpush.bf16.xpose.msra.mxu0 0
    %1292 = vmatpush.bf16.xpose.msra.mxu0 0
    %1293 = vmatpush.bf16.xpose.msra.mxu0 %v1284
    %1294 = vmatmul.bf16.gmra.mxu0 %v1283
    %v1295 = vpop.f32.mrf.mxu0
    %v1296 = vadd.f32 0.0, %v1295
    %v1297 = vpop.f32.mrf.mxu0
    %1298 = vdwg.mxu0
    %v1299 = vmul.f32 %v1296, 0.088388346
    %v1300 = vsel %vm1282, %v1299, -inf
    %vm1301 = vcmask 64512
    %v1302 = vsel %vm1301, %v1300, -inf
    %1303 = vmax.xlane.f32.xlu0 %v1302
    %v1304 = vpop.xlane.xlu0 %1303
    %v1305 = vsub.f32 %v1300, %v1304
    %v1306 = vmul.f32 %v1305, 1.442695
    %v1307 = vpow.pop %v1306
    %v1308 = vsel %vm1301, %v1307, 0.0
    %1309 = vadd.xlane.f32.xlu0 %v1308
    %v1310 = vpop.xlane.xlu0 %1309
    %v1311 = vpack.c.bf16 %v1307, %v1307
    %v1313 = vsel %vm1301, %v1311, 0
    %vm1315 = vcmask 1043456
    %v1317 = vsel %vm1315, %v1285, 0
    %1319 = vmatpush.bf16.msra.mxu0 0
    %1320 = vmatpush.bf16.msra.mxu0 0
    %1321 = vmatpush.bf16.msra.mxu0 0
    %1322 = vmatpush.bf16.msra.mxu0 0
    %1323 = vmatpush.bf16.msra.mxu0 0
    %1324 = vmatpush.bf16.msra.mxu0 0
    %1325 = vmatpush.bf16.msra.mxu0 0
    %1326 = vmatpush.bf16.msra.mxu0 %v1317
    %1327 = vmatmul.bf16.gmra.mxu0 %v1313
    %v1328 = vpop.f32.mrf.mxu0
    %v1329 = vadd.f32 0.0, %v1328
    %v1330 = vpop.f32.mrf.mxu0
    %1331 = vdwg.mxu0
    %v1332 = vrcp.pop %v1310
    %v1333 = vmul.f32 %v1329, %v1332
    %v1334 = vpack.c.bf16 %v978, %v978
    %v1335 = vpack.c.bf16 %v1128, %v1128
    %v1336 = vpack.c.bf16 %v1278, %v1278
    %1337 = vmatpush.bf16.xpose.msra.mxu0 0
    %1338 = vmatpush.bf16.xpose.msra.mxu0 0
    %1339 = vmatpush.bf16.xpose.msra.mxu0 0
    %1340 = vmatpush.bf16.xpose.msra.mxu0 0
    %1341 = vmatpush.bf16.xpose.msra.mxu0 0
    %1342 = vmatpush.bf16.xpose.msra.mxu0 0
    %1343 = vmatpush.bf16.xpose.msra.mxu0 0
    %1344 = vmatpush.bf16.xpose.msra.mxu0 %v1335
    %1345 = vmatmul.bf16.gmra.mxu0 %v1334
    %v1346 = vpop.f32.mrf.mxu0
    %v1347 = vadd.f32 0.0, %v1346
    %v1348 = vpop.f32.mrf.mxu0
    %1349 = vdwg.mxu0
    %v1350 = vmul.f32 %v1347, 0.088388346
    %v1351 = vsel %vm1282, %v1350, -inf
    %v1352 = vsel %vm1301, %v1351, -inf
    %1353 = vmax.xlane.f32.xlu0 %v1352
    %v1354 = vpop.xlane.xlu0 %1353
    %v1355 = vsub.f32 %v1351, %v1354
    %v1356 = vmul.f32 %v1355, 1.442695
    %v1357 = vpow.pop %v1356
    %v1358 = vsel %vm1301, %v1357, 0.0
    %1359 = vadd.xlane.f32.xlu0 %v1358
    %v1360 = vpop.xlane.xlu0 %1359
    %v1361 = vpack.c.bf16 %v1357, %v1357
    %v1363 = vsel %vm1301, %v1361, 0
    %v1366 = vsel %vm1315, %v1336, 0
    %1368 = vmatpush.bf16.msra.mxu0 0
    %1369 = vmatpush.bf16.msra.mxu0 0
    %1370 = vmatpush.bf16.msra.mxu0 0
    %1371 = vmatpush.bf16.msra.mxu0 0
    %1372 = vmatpush.bf16.msra.mxu0 0
    %1373 = vmatpush.bf16.msra.mxu0 0
    %1374 = vmatpush.bf16.msra.mxu0 0
    %1375 = vmatpush.bf16.msra.mxu0 %v1366
    %1376 = vmatmul.bf16.gmra.mxu0 %v1363
    %v1377 = vpop.f32.mrf.mxu0
    %v1378 = vadd.f32 0.0, %v1377
    %v1379 = vpop.f32.mrf.mxu0
    %1380 = vdwg.mxu0
    %v1381 = vrcp.pop %v1360
    %v1382 = vmul.f32 %v1378, %v1381
    %v1383 = vpack.c.bf16 %v939, %v939
    %v1384 = vpack.c.bf16 %v1089, %v1089
    %v1385 = vpack.c.bf16 %v1239, %v1239
    %1386 = vmatpush.bf16.xpose.msra.mxu0 0
    %1387 = vmatpush.bf16.xpose.msra.mxu0 0
    %1388 = vmatpush.bf16.xpose.msra.mxu0 0
    %1389 = vmatpush.bf16.xpose.msra.mxu0 0
    %1390 = vmatpush.bf16.xpose.msra.mxu0 0
    %1391 = vmatpush.bf16.xpose.msra.mxu0 0
    %1392 = vmatpush.bf16.xpose.msra.mxu0 0
    %1393 = vmatpush.bf16.xpose.msra.mxu0 %v1384
    %1394 = vmatmul.bf16.gmra.mxu0 %v1383
    %v1395 = vpop.f32.mrf.mxu0
    %v1396 = vadd.f32 0.0, %v1395
    %v1397 = vpop.f32.mrf.mxu0
    %1398 = vdwg.mxu0
    %v1399 = vmul.f32 %v1396, 0.088388346
    %v1400 = vsel %vm1282, %v1399, -inf
    %v1401 = vsel %vm1301, %v1400, -inf
    %1402 = vmax.xlane.f32.xlu0 %v1401
    %v1403 = vpop.xlane.xlu0 %1402
    %v1404 = vsub.f32 %v1400, %v1403
    %v1405 = vmul.f32 %v1404, 1.442695
    %v1406 = vpow.pop %v1405
    %v1407 = vsel %vm1301, %v1406, 0.0
    %1408 = vadd.xlane.f32.xlu0 %v1407
    %v1409 = vpop.xlane.xlu0 %1408
    %v1410 = vpack.c.bf16 %v1406, %v1406
    %v1412 = vsel %vm1301, %v1410, 0
    %v1415 = vsel %vm1315, %v1385, 0
    %1417 = vmatpush.bf16.msra.mxu0 0
    %1418 = vmatpush.bf16.msra.mxu0 0
    %1419 = vmatpush.bf16.msra.mxu0 0
    %1420 = vmatpush.bf16.msra.mxu0 0
    %1421 = vmatpush.bf16.msra.mxu0 0
    %1422 = vmatpush.bf16.msra.mxu0 0
    %1423 = vmatpush.bf16.msra.mxu0 0
    %1424 = vmatpush.bf16.msra.mxu0 %v1415
    %1425 = vmatmul.bf16.gmra.mxu0 %v1412
    %v1426 = vpop.f32.mrf.mxu0
    %v1427 = vadd.f32 0.0, %v1426
    %v1428 = vpop.f32.mrf.mxu0
    %1429 = vdwg.mxu0
    %v1430 = vrcp.pop %v1409
    %v1431 = vmul.f32 %v1427, %v1430
    %v1432 = vpack.c.bf16 %v979, %v979
    %v1433 = vpack.c.bf16 %v1129, %v1129
    %v1434 = vpack.c.bf16 %v1279, %v1279
    %1435 = vmatpush.bf16.xpose.msra.mxu0 0
    %1436 = vmatpush.bf16.xpose.msra.mxu0 0
    %1437 = vmatpush.bf16.xpose.msra.mxu0 0
    %1438 = vmatpush.bf16.xpose.msra.mxu0 0
    %1439 = vmatpush.bf16.xpose.msra.mxu0 0
    %1440 = vmatpush.bf16.xpose.msra.mxu0 0
    %1441 = vmatpush.bf16.xpose.msra.mxu0 0
    %1442 = vmatpush.bf16.xpose.msra.mxu0 %v1433
    %1443 = vmatmul.bf16.gmra.mxu0 %v1432
    %v1444 = vpop.f32.mrf.mxu0
    %v1445 = vadd.f32 0.0, %v1444
    %v1446 = vpop.f32.mrf.mxu0
    %1447 = vdwg.mxu0
    %v1448 = vmul.f32 %v1445, 0.088388346
    %v1449 = vsel %vm1282, %v1448, -inf
    %v1450 = vsel %vm1301, %v1449, -inf
    %1451 = vmax.xlane.f32.xlu0 %v1450
    %v1452 = vpop.xlane.xlu0 %1451
    %v1453 = vsub.f32 %v1449, %v1452
    %v1454 = vmul.f32 %v1453, 1.442695
    %v1455 = vpow.pop %v1454
    %v1456 = vsel %vm1301, %v1455, 0.0
    %1457 = vadd.xlane.f32.xlu0 %v1456
    %v1458 = vpop.xlane.xlu0 %1457
    %v1459 = vpack.c.bf16 %v1455, %v1455
    %v1461 = vsel %vm1301, %v1459, 0
    %v1464 = vsel %vm1315, %v1434, 0
    %1466 = vmatpush.bf16.msra.mxu0 0
    %1467 = vmatpush.bf16.msra.mxu0 0
    %1468 = vmatpush.bf16.msra.mxu0 0
    %1469 = vmatpush.bf16.msra.mxu0 0
    %1470 = vmatpush.bf16.msra.mxu0 0
    %1471 = vmatpush.bf16.msra.mxu0 0
    %1472 = vmatpush.bf16.msra.mxu0 0
    %1473 = vmatpush.bf16.msra.mxu0 %v1464
    %1474 = vmatmul.bf16.gmra.mxu0 %v1461
    %v1475 = vpop.f32.mrf.mxu0
    %v1476 = vadd.f32 0.0, %v1475
    %v1477 = vpop.f32.mrf.mxu0
    %1478 = vdwg.mxu0
    %v1479 = vrcp.pop %v1458
    %v1480 = vmul.f32 %v1476, %v1479
    %v1481 = vmin.f32 %v1333, %v1382
    %v1482 = vmin.f32 %v1431, %v1480
    %v1483 = vmin.f32 %v1481, %v1482
    %1484 = vmin.xlane.f32.xlu0 %v1483
    %v1485 = vpop.xlane.xlu0 %1484
    %v1486 = vrot.slane %v1485, 4
    %v1487 = vmin.f32 %v1485, %v1486
    %v1488 = vrot.slane %v1487, 2
    %v1489 = vmin.f32 %v1487, %v1488
    %v1490 = vrot.slane %v1489, 1
    %v1491 = vmin.f32 %v1489, %v1490
    %s1492 = vtos %v1491
    %v1493 = vmax.f32 %v1333, %v1382
    %v1494 = vmax.f32 %v1431, %v1480
    %v1495 = vmax.f32 %v1493, %v1494
    %1496 = vmax.xlane.f32.xlu0 %v1495
    %v1497 = vpop.xlane.xlu0 %1496
    %v1498 = vrot.slane %v1497, 4
    %v1499 = vmax.f32 %v1497, %v1498
    %v1500 = vrot.slane %v1499, 2
    %v1501 = vmax.f32 %v1499, %v1500
    %v1502 = vrot.slane %v1501, 1
    %v1503 = vmax.f32 %v1501, %v1502
    %s1504 = vtos %v1503
    %s1505 = ssub.f32 %s1504, %s1492
    %v1506 = vrcp.pop 16.0
    %v1507 = vmul.f32 16.0, %v1506
    %v1508 = vsub.f32 1.0, %v1507
    %v1509 = vmul.f32 %v1506, %v1508
    %v1510 = vadd.f32 %v1506, %v1509
    %vm1511 = vweird.f32 %v1506
    %v1512 = vsel %vm1511, %v1506, %v1510
    %s1513 = vtos %v1512
    %s1514 = smul.f32 %s1505, %s1513
    %v1515 = vstv %s1492
    %v1516 = vsub.f32 %v1333, %v1515
    %v1517 = vsub.f32 %v1382, %v1515
    %v1518 = vsub.f32 %v1431, %v1515
    %v1519 = vsub.f32 %v1480, %v1515
    %s1520 = smul.f32 %s1514, 0.5
    %v1521 = vstv %s1520
    %v1522 = vadd.f32 %v1516, %v1521
    %v1523 = vadd.f32 %v1517, %v1521
    %v1524 = vadd.f32 %v1518, %v1521
    %v1525 = vadd.f32 %v1519, %v1521
    %v1526 = vstv %s1514
    %v1527 = vrcp.pop %v1526
    %v1528 = vmul.f32 %v1526, %v1527
    %v1529 = vsub.f32 1.0, %v1528
    %v1530 = vmul.f32 %v1527, %v1529
    %v1531 = vadd.f32 %v1527, %v1530
    %vm1532 = vweird.f32 %v1526
    %vm1533 = vweird.f32 %v1527
    %vm1534 = vmor %vm1532, %vm1533
    %v1535 = vsel %vm1534, %v1527, %v1531
    %v1536 = vand.u32 2147483647, %v1526
    %vm1537 = vcmp.eq.f32.partialorder %v1536, 8.507059e+37
    %v1538 = vand.u32 %v1526, 2147483648
    %v1539 = vor.u32 1.1754944e-38, %v1538
    %v1540 = vsel %vm1537, %v1539, %v1535
    %v1541 = vmul.f32 %v1522, %v1540
    %v1542 = vmul.f32 %v1523, %v1540
    %v1543 = vmul.f32 %v1524, %v1540
    %v1544 = vmul.f32 %v1525, %v1540
    %v1545 = vfloor.f32 %v1541
    %v1546 = vfloor.f32 %v1542
    %v1547 = vfloor.f32 %v1543
    %v1548 = vfloor.f32 %v1544
    %v1549 = vadd.s32 %v903, 128
    %vm1550 = vcmp.lt.s32.totalorder %v903, 128
    %vm1551 = vcmp.lt.s32.totalorder %v1549, 128
    %v1552 = vsel %vm1550, %v1545, %v1546
    %v1553 = vsel %vm1551, %v1546, %v1545
    %v1554 = vsel %vm1550, %v1547, %v1548
    %v1555 = vsel %vm1551, %v1548, %v1547
    %v1556 = vsel %vm1550, %v1546, %v1545
    %v1557 = vsel %vm1551, %v1545, %v1546
    %v1558 = vsel %vm1550, %v1548, %v1547
    %v1559 = vsel %vm1551, %v1547, %v1548
    %v1560 = vmul.f32 %v1552, 16.0
    %v1561 = vmul.f32 %v1553, 16.0
    %v1562 = vmul.f32 %v1554, 16.0
    %v1563 = vmul.f32 %v1555, 16.0
    %v1564 = vadd.f32 %v1560, %v1556
    %v1565 = vadd.f32 %v1561, %v1557
    %v1566 = vadd.f32 %v1562, %v1558
    %v1567 = vadd.f32 %v1563, %v1559
    %vm1568 = vcmp.ge.f32.partialorder %v1564, 256.0
    %vm1569 = vcmp.ge.f32.partialorder %v1565, 256.0
    %vm1570 = vcmp.ge.f32.partialorder %v1566, 256.0
    %vm1571 = vcmp.ge.f32.partialorder %v1567, 256.0
    %v1572 = vsub.f32 %v1564, 256.0
    %v1573 = vsub.f32 %v1565, 256.0
    %v1574 = vsub.f32 %v1566, 256.0
    %v1575 = vsub.f32 %v1567, 256.0
    %v1576 = vsel %vm1568, %v1572, %v1564
    %v1577 = vsel %vm1569, %v1573, %v1565
    %v1578 = vsel %vm1570, %v1574, %v1566
    %v1579 = vsel %vm1571, %v1575, %v1567
    %v1580 = vmul.f32 %v1576, %v925
    %v1581 = vmul.f32 %v1577, %v925
    %v1582 = vmul.f32 %v1578, %v925
    %v1583 = vmul.f32 %v1579, %v925
    %v1584 = vfloor.f32 %v1580
    %v1585 = vfloor.f32 %v1581
    %v1586 = vfloor.f32 %v1582
    %v1587 = vfloor.f32 %v1583
    %v1588 = vmul.f32 %v1584, 16.0
    %v1589 = vmul.f32 %v1585, 16.0
    %v1590 = vmul.f32 %v1586, 16.0
    %v1591 = vmul.f32 %v1587, 16.0
    %v1592 = vsub.f32 %v1576, %v1588
    %v1593 = vsub.f32 %v1577, %v1589
    %v1594 = vsub.f32 %v1578, %v1590
    %v1595 = vsub.f32 %v1579, %v1591
    %v1596 = vsel %vm1550, %v1584, %v1592
    %v1597 = vsel %vm1551, %v1585, %v1593
    %v1598 = vsel %vm1550, %v1586, %v1594
    %v1599 = vsel %vm1551, %v1587, %v1595
    %v1600 = vmul.f32 %v1596, %v1526
    %v1601 = vmul.f32 %v1597, %v1526
    %v1602 = vmul.f32 %v1598, %v1526
    %v1603 = vmul.f32 %v1599, %v1526
    %v1604 = vadd.f32 %v1600, %v1515
    %v1605 = vadd.f32 %v1601, %v1515
    %v1606 = vadd.f32 %v1602, %v1515
    %v1607 = vadd.f32 %v1603, %v1515
    %v1608 = vpack.c.bf16 %v1606, %v1604
    %v1609 = vpack.c.bf16 %v1607, %v1605
    %v1610 = vld [vmem:[#allocation4] sm:$0xff]
    %v1611 = vld [vmem:[#allocation4 + $0x8] sm:$0xff]
    %v1612 = vld [vmem:[#allocation4 + $0x10] sm:$0xff]
    %v1613 = vld [vmem:[#allocation4 + $0x18] sm:$0xff]
    %v1614 = vld [vmem:[#allocation4 + $0x20] sm:$0xff]
    %v1615 = vld [vmem:[#allocation4 + $0x28] sm:$0xff]
    %v1616 = vld [vmem:[#allocation4 + $0x30] sm:$0xff]
    %v1617 = vld [vmem:[#allocation4 + $0x38] sm:$0xff]
    %v1618 = vld [vmem:[#allocation4 + $0x40] sm:$0xff]
    %v1619 = vld [vmem:[#allocation4 + $0x48] sm:$0xff]
    %v1620 = vld [vmem:[#allocation4 + $0x50] sm:$0xff]
    %v1621 = vld [vmem:[#allocation4 + $0x58] sm:$0xff]
    %v1622 = vld [vmem:[#allocation4 + $0x60] sm:$0xff]
    %v1623 = vld [vmem:[#allocation4 + $0x68] sm:$0xff]
    %v1624 = vld [vmem:[#allocation4 + $0x70] sm:$0xff]
    %v1625 = vld [vmem:[#allocation4 + $0x78] sm:$0xff]
    %v1626 = vld [vmem:[#allocation4 + $0x80] sm:$0xff]
    %v1627 = vld [vmem:[#allocation4 + $0x88] sm:$0xff]
    %v1628 = vld [vmem:[#allocation4 + $0x90] sm:$0xff]
    %v1629 = vld [vmem:[#allocation4 + $0x98] sm:$0xff]
    %v1630 = vld [vmem:[#allocation4 + $0xa0] sm:$0xff]
    %v1631 = vld [vmem:[#allocation4 + $0xa8] sm:$0xff]
    %v1632 = vld [vmem:[#allocation4 + $0xb0] sm:$0xff]
    %v1633 = vld [vmem:[#allocation4 + $0xb8] sm:$0xff]
    %v1634 = vld [vmem:[#allocation4 + $0xc0] sm:$0xff]
    %v1635 = vld [vmem:[#allocation4 + $0xc8] sm:$0xff]
    %v1636 = vld [vmem:[#allocation4 + $0xd0] sm:$0xff]
    %v1637 = vld [vmem:[#allocation4 + $0xd8] sm:$0xff]
    %v1638 = vld [vmem:[#allocation4 + $0xe0] sm:$0xff]
    %v1639 = vld [vmem:[#allocation4 + $0xe8] sm:$0xff]
    %v1640 = vld [vmem:[#allocation4 + $0xf0] sm:$0xff]
    %v1641 = vld [vmem:[#allocation4 + $0xf8] sm:$0xff]
    %v1674 = vunpack.c.l.b16 %v1610
    %v1675 = vunpack.c.h.b16 %v1610
    %v1676 = vunpack.c.l.b16 %v1611
    %v1677 = vunpack.c.h.b16 %v1611
    %v1678 = vunpack.c.l.b16 %v1612
    %v1679 = vunpack.c.h.b16 %v1612
    %v1680 = vunpack.c.l.b16 %v1613
    %v1681 = vunpack.c.h.b16 %v1613
    %v1682 = vunpack.c.l.b16 %v1614
    %v1683 = vunpack.c.h.b16 %v1614
    %v1684 = vunpack.c.l.b16 %v1615
    %v1685 = vunpack.c.h.b16 %v1615
    %v1686 = vunpack.c.l.b16 %v1616
    %v1687 = vunpack.c.h.b16 %v1616
    %v1688 = vunpack.c.l.b16 %v1617
    %v1689 = vunpack.c.h.b16 %v1617
    %v1690 = vunpack.c.l.b16 %v1618
    %v1691 = vunpack.c.h.b16 %v1618
    %v1692 = vunpack.c.l.b16 %v1619
    %v1693 = vunpack.c.h.b16 %v1619
    %v1694 = vunpack.c.l.b16 %v1620
    %v1695 = vunpack.c.h.b16 %v1620
    %v1696 = vunpack.c.l.b16 %v1621
    %v1697 = vunpack.c.h.b16 %v1621
    %v1698 = vunpack.c.l.b16 %v1622
    %v1699 = vunpack.c.h.b16 %v1622
    %v1700 = vunpack.c.l.b16 %v1623
    %v1701 = vunpack.c.h.b16 %v1623
    %v1702 = vunpack.c.l.b16 %v1624
    %v1703 = vunpack.c.h.b16 %v1624
    %v1704 = vunpack.c.l.b16 %v1625
    %v1705 = vunpack.c.h.b16 %v1625
    %v1706 = vunpack.c.l.b16 %v1626
    %v1707 = vunpack.c.h.b16 %v1626
    %v1708 = vunpack.c.l.b16 %v1627
    %v1709 = vunpack.c.h.b16 %v1627
    %v1710 = vunpack.c.l.b16 %v1628
    %v1711 = vunpack.c.h.b16 %v1628
    %v1712 = vunpack.c.l.b16 %v1629
    %v1713 = vunpack.c.h.b16 %v1629
    %v1714 = vunpack.c.l.b16 %v1630
    %v1715 = vunpack.c.h.b16 %v1630
    %v1716 = vunpack.c.l.b16 %v1631
    %v1717 = vunpack.c.h.b16 %v1631
    %v1718 = vunpack.c.l.b16 %v1632
    %v1719 = vunpack.c.h.b16 %v1632
    %v1720 = vunpack.c.l.b16 %v1633
    %v1721 = vunpack.c.h.b16 %v1633
    %v1722 = vunpack.c.l.b16 %v1634
    %v1723 = vunpack.c.h.b16 %v1634
    %v1724 = vunpack.c.l.b16 %v1635
    %v1725 = vunpack.c.h.b16 %v1635
    %v1726 = vunpack.c.l.b16 %v1636
    %v1727 = vunpack.c.h.b16 %v1636
    %v1728 = vunpack.c.l.b16 %v1637
    %v1729 = vunpack.c.h.b16 %v1637
    %v1730 = vunpack.c.l.b16 %v1638
    %v1731 = vunpack.c.h.b16 %v1638
    %v1732 = vunpack.c.l.b16 %v1639
    %v1733 = vunpack.c.h.b16 %v1639
    %v1734 = vunpack.c.l.b16 %v1640
    %v1735 = vunpack.c.h.b16 %v1640
    %v1736 = vunpack.c.l.b16 %v1641
    %v1737 = vunpack.c.h.b16 %v1641
    %v1738 = vpack.c.b16 %v1676, %v1674
    %v1739 = vpack.c.b16 %v1677, %v1675
    %v1740 = vpack.c.b16 %v1680, %v1678
    %v1741 = vpack.c.b16 %v1681, %v1679
    %v1742 = vpack.c.b16 %v1684, %v1682
    %v1743 = vpack.c.b16 %v1685, %v1683
    %v1744 = vpack.c.b16 %v1688, %v1686
    %v1745 = vpack.c.b16 %v1689, %v1687
    %v1746 = vpack.c.b16 %v1692, %v1690
    %v1747 = vpack.c.b16 %v1693, %v1691
    %v1748 = vpack.c.b16 %v1696, %v1694
    %v1749 = vpack.c.b16 %v1697, %v1695
    %v1750 = vpack.c.b16 %v1700, %v1698
    %v1751 = vpack.c.b16 %v1701, %v1699
    %v1752 = vpack.c.b16 %v1704, %v1702
    %v1753 = vpack.c.b16 %v1705, %v1703
    %v1754 = vpack.c.b16 %v1708, %v1706
    %v1755 = vpack.c.b16 %v1709, %v1707
    %v1756 = vpack.c.b16 %v1712, %v1710
    %v1757 = vpack.c.b16 %v1713, %v1711
    %v1758 = vpack.c.b16 %v1716, %v1714
    %v1759 = vpack.c.b16 %v1717, %v1715
    %v1760 = vpack.c.b16 %v1720, %v1718
    %v1761 = vpack.c.b16 %v1721, %v1719
    %v1762 = vpack.c.b16 %v1724, %v1722
    %v1763 = vpack.c.b16 %v1725, %v1723
    %v1764 = vpack.c.b16 %v1728, %v1726
    %v1765 = vpack.c.b16 %v1729, %v1727
    %v1766 = vpack.c.b16 %v1732, %v1730
    %v1767 = vpack.c.b16 %v1733, %v1731
    %v1768 = vpack.c.b16 %v1736, %v1734
    %v1769 = vpack.c.b16 %v1737, %v1735
    %1802 = vmatpush.bf16.xpose.msra.mxu0 %v1752
    %1803 = vmatpush.bf16.xpose.msra.mxu0 %v1750
    %1804 = vmatpush.bf16.xpose.msra.mxu0 %v1748
    %1805 = vmatpush.bf16.xpose.msra.mxu0 %v1746
    %1806 = vmatpush.bf16.xpose.msra.mxu0 %v1744
    %1807 = vmatpush.bf16.xpose.msra.mxu0 %v1742
    %1808 = vmatpush.bf16.xpose.msra.mxu0 %v1740
    %1809 = vmatpush.bf16.xpose.msra.mxu0 %v1738
    %1810 = vmatmul.bf16.gmra.mxu0 %v1608
    %v1811 = vpop.f32.mrf.mxu0
    %v1812 = vadd.f32 0.0, %v1811
    %v1813 = vpop.f32.mrf.mxu0
    %v1814 = vadd.f32 0.0, %v1813
    %1815 = vdwg.mxu0
    %1816 = vmatpush.bf16.xpose.msra.mxu0 %v1753
    %1817 = vmatpush.bf16.xpose.msra.mxu0 %v1751
    %1818 = vmatpush.bf16.xpose.msra.mxu0 %v1749
    %1819 = vmatpush.bf16.xpose.msra.mxu0 %v1747
    %1820 = vmatpush.bf16.xpose.msra.mxu0 %v1745
    %1821 = vmatpush.bf16.xpose.msra.mxu0 %v1743
    %1822 = vmatpush.bf16.xpose.msra.mxu0 %v1741
    %1823 = vmatpush.bf16.xpose.msra.mxu0 %v1739
    %1824 = vmatmul.bf16.gmra.mxu0 %v1609
    %v1825 = vpop.f32.mrf.mxu0
    %v1826 = vadd.f32 %v1812, %v1825
    %v1827 = vpop.f32.mrf.mxu0
    %v1828 = vadd.f32 %v1814, %v1827
    %1829 = vdwg.mxu0
    %1830 = vmatpush.bf16.xpose.msra.mxu0 %v1768
    %1831 = vmatpush.bf16.xpose.msra.mxu0 %v1766
    %1832 = vmatpush.bf16.xpose.msra.mxu0 %v1764
    %1833 = vmatpush.bf16.xpose.msra.mxu0 %v1762
    %1834 = vmatpush.bf16.xpose.msra.mxu0 %v1760
    %1835 = vmatpush.bf16.xpose.msra.mxu0 %v1758
    %1836 = vmatpush.bf16.xpose.msra.mxu0 %v1756
    %1837 = vmatpush.bf16.xpose.msra.mxu0 %v1754
    %1838 = vmatmul.bf16.gmra.mxu0 %v1608
    %v1839 = vpop.f32.mrf.mxu0
    %v1840 = vadd.f32 0.0, %v1839
    %v1841 = vpop.f32.mrf.mxu0
    %v1842 = vadd.f32 0.0, %v1841
    %1843 = vdwg.mxu0
    %1844 = vmatpush.bf16.xpose.msra.mxu0 %v1769
    %1845 = vmatpush.bf16.xpose.msra.mxu0 %v1767
    %1846 = vmatpush.bf16.xpose.msra.mxu0 %v1765
    %1847 = vmatpush.bf16.xpose.msra.mxu0 %v1763
    %1848 = vmatpush.bf16.xpose.msra.mxu0 %v1761
    %1849 = vmatpush.bf16.xpose.msra.mxu0 %v1759
    %1850 = vmatpush.bf16.xpose.msra.mxu0 %v1757
    %1851 = vmatpush.bf16.xpose.msra.mxu0 %v1755
    %1852 = vmatmul.bf16.gmra.mxu0 %v1609
    %v1853 = vpop.f32.mrf.mxu0
    %v1854 = vadd.f32 %v1840, %v1853
    %v1855 = vpop.f32.mrf.mxu0
    %v1856 = vadd.f32 %v1842, %v1855
    %1857 = vdwg.mxu0
    %1858 = vst [vmem:[%s4] sm:$0xff] %v1826
    %1859 = vst [vmem:[%s4 + $0x8] sm:$0xff] %v1854
    %1860 = vst [vmem:[%s4 + $0x10] sm:$0xff] %v1828
    %1861 = vst [vmem:[%s4 + $0x18] sm:$0xff] %v1856
    // Predicated region
    $region26: #{attention_forward.1} parent=1 // pred_check
      _
    $region27: #{attention_forward.1} parent=1 // pred_check_branch
      %1863 = sbr.rel (0) target = $region29
    $region28: #{attention_forward.1} parent=1 // pred_region
      _
    $region29: #{attention_forward.1} parent=1 // pred_fallthru
      _
    // Predicated region
    $region30: #{attention_forward.1} parent=1 // pred_check
      _
    $region31: #{attention_forward.1} parent=1 // pred_check_branch
      %1865 = sbr.rel (0) target = $region33
    $region32: #{attention_forward.1} parent=1 // pred_region
      _
    $region33: #{attention_forward.1} parent=1 // pred_fallthru
      _
    %1866 = vsyncpa [#allocation3], 1
    %1867 = vsyncpa [#allocation5], 1

</llo_original>
